<compile_context>
chip_gen: v7x
topology: tpu7x:2x2x1
jax: 0.10.0
libtpu: 0.0.40
codegen_flags: <defaults>
</compile_context>

<pallas_src>
import functools

import jax
import jax.numpy as jnp
import numpy as np
from jax import lax
from jax.experimental import pallas as pl
from jax.experimental.pallas import tpu as pltpu


# -----------------------------------------------------------------------------
# Kernel: projections + flash-style attention + output projection.
# Grid: (batch, kv_block); batch is "parallel", kv_block is "arbitrary".
# -----------------------------------------------------------------------------
def _mha_kernel(q_ref, k_ref, v_ref,
                wq_ref, bq_ref, wk_ref, bk_ref, wv_ref, bv_ref,
                wo_ref, bo_ref,
                *rest,
                n_head, d_qk, d_v, has_mask, compute_dtype, approx_recip):
    if has_mask:
        mask_ref, out_ref, qh_scr, m_scr, l_scr, acc_scr = rest
    else:
        out_ref, qh_scr, m_scr, l_scr, acc_scr = rest
        mask_ref = None

    f32 = jnp.float32
    s_idx = pl.program_id(1)
    n_s = pl.num_programs(1)

    dh = d_qk // n_head
    dhv = d_v // n_head
    tq = q_ref.shape[2]
    tsb = k_ref.shape[2]

    # ---- once per batch: project Q (scale pre-folded into wq/bq), init stats.
    @pl.when(s_idx == 0)
    def _():
        qp = jnp.dot(wq_ref[...], q_ref[0], preferred_element_type=f32) + bq_ref[...]
        qh_scr[...] = qp.astype(compute_dtype).reshape(n_head, dh, tq)
        m_scr[...] = jnp.full(m_scr.shape, -jnp.inf, f32)
        l_scr[...] = jnp.zeros(l_scr.shape, f32)
        acc_scr[...] = jnp.zeros(acc_scr.shape, f32)

    # ---- per KV block: project K/V for this block only (pipelined DMA).
    kp = jnp.dot(wk_ref[...], k_ref[0], preferred_element_type=f32) + bk_ref[...]
    vp = jnp.dot(wv_ref[...], v_ref[0], preferred_element_type=f32) + bv_ref[...]
    kh = kp.astype(compute_dtype).reshape(n_head, dh, tsb)   # (H, dh,  tsb)
    vh = vp.astype(compute_dtype).reshape(n_head, dhv, tsb)  # (H, dhv, tsb)

    # Scores for all heads in one batched MXU contraction; no LHS transpose --
    # contract dh on both operands directly.
    s = lax.dot_general(qh_scr[...], kh, (((1,), (1,)), ((0,), (0,))),
                        preferred_element_type=f32)          # (H, Tq, tsb)
    if has_mask:
        s = s + mask_ref[0]                                  # (Tq|1, tsb) bcast, f32

    # Online softmax over the source axis (matches torch softmax(dim=1) on
    # (b, k, h, q)); all statistics stay in f32.
    m_prev = m_scr[...]                                      # (H, Tq, 1)
    m_new = jnp.maximum(m_prev, jnp.max(s, axis=-1, keepdims=True))
    alpha = jnp.exp(m_prev - m_new)
    p = jnp.exp(s - m_new)                                   # (H, Tq, tsb)
    l_scr[...] = alpha * l_scr[...] + jnp.sum(p, axis=-1, keepdims=True)
    pv = lax.dot_general(p.astype(compute_dtype), vh,
                         (((2,), (2,)), ((0,), (0,))),
                         preferred_element_type=f32)         # (H, Tq, dhv)
    acc_scr[...] = alpha * acc_scr[...] + pv
    m_scr[...] = m_new

    # ---- once per batch (last KV block): normalize, merge heads, out proj.
    @pl.when(s_idx == n_s - 1)
    def _():
        inv_l = pl.reciprocal(l_scr[...], approx=approx_recip)
        ctx = (acc_scr[...] * inv_l).astype(compute_dtype)   # (H, Tq, dhv)
        ctx = jnp.swapaxes(ctx, 1, 2).reshape(d_v, tq)       # (d_v, Tq), once/batch
        out = jnp.dot(wo_ref[...], ctx, preferred_element_type=f32) + bo_ref[...]
        out_ref[0] = out.astype(out_ref.dtype)


# -----------------------------------------------------------------------------
# Parameter construction (deterministic xavier_uniform, zero bias) + one-time
# kernel-side preparation (scale folding, dtype cast, bias reshape).
# -----------------------------------------------------------------------------
def make_params(key, embed_dim, d_qk, d_v, d_out):
    def xavier(key, out_c, in_c):
        bound = float(np.sqrt(6.0 / (in_c + out_c)))
        return jax.random.uniform(key, (out_c, in_c), jnp.float32, -bound, bound)

    ks = jax.random.split(key, 4)
    return dict(
        wq=xavier(ks[0], d_qk, embed_dim), bq=jnp.zeros((d_qk,), jnp.float32),
        wk=xavier(ks[1], d_qk, embed_dim), bk=jnp.zeros((d_qk,), jnp.float32),
        wv=xavier(ks[2], d_v, embed_dim), bv=jnp.zeros((d_v,), jnp.float32),
        wo=xavier(ks[3], d_out, d_v), bo=jnp.zeros((d_out,), jnp.float32),
    )


def prepare_params(params, *, n_head, compute_dtype=jnp.bfloat16):
    """One-time prep: fold the 1/sqrt(d_head) query scale into wq/bq, cast MXU
    operands to compute_dtype, reshape biases for channels-first broadcast.
    NOTE: scale is folded before the bf16 cast (rounds slightly differently
    than scaling after projection; negligible for inference)."""
    d_qk = params["wq"].shape[0]
    scale = float(d_qk // n_head) ** (-0.5)
    f32 = jnp.float32
    return dict(
        wq=(params["wq"] * scale).astype(compute_dtype),
        bq=(params["bq"] * scale).astype(f32)[:, None],
        wk=params["wk"].astype(compute_dtype),
        bk=params["bk"].astype(f32)[:, None],
        wv=params["wv"].astype(compute_dtype),
        bv=params["bv"].astype(f32)[:, None],
        wo=params["wo"].astype(compute_dtype),
        bo=params["bo"].astype(f32)[:, None],
    )


def _vmem_limit_bytes():
    """Chip-aware scoped-VMEM budget: <=~48 MiB on v7x (64 MiB VMEM),
    up to 96 MiB on v5e/v6e (128 MiB VMEM)."""
    try:
        cap = int(pltpu.get_tpu_info().vmem_capacity_bytes)
    except Exception:
        cap = 64 * 1024 * 1024
    return int(max(32 << 20, min(cap - (16 << 20), 96 << 20)))


# -----------------------------------------------------------------------------
# Wrapper: NCHW glue (reshapes only for q/k/v/out) + pallas_call
# -----------------------------------------------------------------------------
def mha_forward(q, k, v, prep, qk_mask=None, k_mask=None, *, n_head=8,
                compute_dtype=jnp.bfloat16, out_dtype=jnp.bfloat16,
                kv_block_len=512, approx_recip=True):
    """q,k,v: NCHW (B, embed_dim, H, W). Returns NCHW (B, d_out, Hq, Wq)."""
    b, e, hq, wq_sp = q.shape
    _, _, hk, wk_sp = k.shape
    tq = hq * wq_sp
    ts = hk * wk_sp

    d_qk = prep["wq"].shape[0]
    d_v = prep["wv"].shape[0]
    d_out = prep["wo"].shape[0]
    assert d_qk % n_head == 0 and d_v % n_head == 0

    # NCHW (B,C,1,S) -> (B,C,S): pure reshape.  bf16 operands halve kernel DMA.
    q_cs = q.reshape(b, e, tq).astype(compute_dtype)
    k_cs = k.reshape(b, e, ts).astype(compute_dtype)
    v_cs = v.reshape(b, e, ts).astype(compute_dtype)

    # KV-block length: lane-aligned multiple of 128, or the whole src length.
    if ts >= 2 * kv_block_len and ts % kv_block_len == 0 and kv_block_len % 128 == 0:
        tsb = kv_block_len
    else:
        tsb = ts  # TODO(synk): pad/mask ragged source lengths for tiling.
    n_s = ts // tsb

    # Combine masks ONCE in the wrapper, already query-major (B, Tq, Ts) ->
    # no in-kernel transpose, and no mask input at all when both are None.
    if qk_mask is None and k_mask is None:
        mask = None
    else:
        parts = []
        if qk_mask is not None:
            parts.append(jnp.transpose(qk_mask[:, :, 0, :], (0, 2, 1)))  # (B,Tq,Ts)
        if k_mask is not None:
            parts.append(k_mask[:, :, 0, 0][:, None, :])                 # (B,1,Ts)
        mask = parts[0] if len(parts) == 1 else parts[0] + parts[1]
        mask = mask.astype(jnp.float32)
    has_mask = mask is not None
    mrows = mask.shape[1] if has_mask else 0

    kernel = functools.partial(
        _mha_kernel, n_head=n_head, d_qk=d_qk, d_v=d_v, has_mask=has_mask,
        compute_dtype=compute_dtype, approx_recip=approx_recip)

    wfull = lambda i, s: (0, 0)  # noqa: E731 (whole-array weight/bias blocks)

    in_specs = [
        pl.BlockSpec((1, e, tq), lambda i, s: (i, 0, 0)),    # q (resident/batch)
        pl.BlockSpec((1, e, tsb), lambda i, s: (i, 0, s)),   # k block
        pl.BlockSpec((1, e, tsb), lambda i, s: (i, 0, s)),   # v block
        pl.BlockSpec((d_qk, e), wfull),                      # wq (scale folded)
        pl.BlockSpec((d_qk, 1), wfull),                      # bq (scale folded)
        pl.BlockSpec((d_qk, e), wfull),                      # wk
        pl.BlockSpec((d_qk, 1), wfull),                      # bk
        pl.BlockSpec((d_v, e), wfull),                       # wv
        pl.BlockSpec((d_v, 1), wfull),                       # bv
        pl.BlockSpec((d_out, d_v), wfull),                   # wo
        pl.BlockSpec((d_out, 1), wfull),                     # bo
    ]
    args = [q_cs, k_cs, v_cs,
            prep["wq"], prep["bq"], prep["wk"], prep["bk"],
            prep["wv"], prep["bv"], prep["wo"], prep["bo"]]
    if has_mask:
        in_specs.append(pl.BlockSpec((1, mrows, tsb), lambda i, s: (i, 0, s)))
        args.append(mask)

    out_cs = pl.pallas_call(
        kernel,
        out_shape=jax.ShapeDtypeStruct((b, d_out, tq), out_dtype),
        grid_spec=pltpu.PrefetchScalarGridSpec(
            num_scalar_prefetch=0,
            grid=(b, n_s),
            in_specs=in_specs,
            out_specs=pl.BlockSpec((1, d_out, tq), lambda i, s: (i, 0, 0)),
            scratch_shapes=[
                pltpu.VMEM((n_head, d_qk // n_head, tq), compute_dtype),  # qh
                pltpu.VMEM((n_head, tq, 1), jnp.float32),                 # m
                pltpu.VMEM((n_head, tq, 1), jnp.float32),                 # l
                pltpu.VMEM((n_head, tq, d_v // n_head), jnp.float32),     # acc
            ]),
        compiler_params=pltpu.CompilerParams(
            dimension_semantics=("parallel", "arbitrary"),
            vmem_limit_bytes=_vmem_limit_bytes()),
    )(*args)

    # (B, d_out, Tq) -> NCHW (B, d_out, Hq, Wq): pure reshape.
    return out_cs.reshape(b, d_out, hq, wq_sp)


# -----------------------------------------------------------------------------
# Pure-JAX reference (mirrors the SPLIT_EINSUM torch path) for validation
# -----------------------------------------------------------------------------
def mha_reference(q, k, v, params, qk_mask, k_mask, *, n_head=8):
    b, e, hq, wq_sp = q.shape
    _, _, hk, wk_sp = k.shape
    tq, ts = hq * wq_sp, hk * wk_sp
    d_qk = params["wq"].shape[0]
    d_v = params["wv"].shape[0]
    scale = float(d_qk // n_head) ** (-0.5)

    def conv1x1(x, w, bias):  # x: (B, C, S)
        return jnp.einsum("oc,bcs->bos", w, x) + bias[None, :, None]

    qf = conv1x1(q.reshape(b, e, tq), params["wq"], params["bq"]) * scale
    kf = conv1x1(k.reshape(b, e, ts), params["wk"], params["bk"])
    vf = conv1x1(v.reshape(b, e, ts), params["wv"], params["bv"])

    dh, dhv = d_qk // n_head, d_v // n_head
    ctx = []
    for h in range(n_head):
        qi = qf[:, h * dh:(h + 1) * dh]          # (B, dh, Tq)
        ki = kf[:, h * dh:(h + 1) * dh]          # (B, dh, Ts)
        vi = vf[:, h * dhv:(h + 1) * dhv]        # (B, dhv, Ts)
        w = jnp.einsum("bcq,bck->bkq", qi, ki)   # (B, Ts, Tq)
        if qk_mask is not None:
            w = w + qk_mask[:, :, 0, :]
        if k_mask is not None:
            w = w + k_mask[:, :, 0, :]
        w = jax.nn.softmax(w, axis=1)
        ctx.append(jnp.einsum("bkq,bck->bcq", w, vi))
    attn = jnp.concatenate(ctx, axis=1)          # (B, d_v, Tq)
    out = conv1x1(attn, params["wo"], params["bo"])
    return out.reshape(b, -1, hq, wq_sp)


# -----------------------------------------------------------------------------
if __name__ == "__main__":
    B, EMBED, N_HEAD = 2, 64, 4
    HQ, WQ = 1, 8        # tgt_seq_len = 8
    HK, WK = 1, 256      # src_seq_len = 256 (2 KV blocks of 128)
    TQ, TS = HQ * WQ, HK * WK

    key = jax.random.PRNGKey(0)
    kq, kk, kv, kp = jax.random.split(key, 4)

    q = jax.random.normal(kq, (B, EMBED, HQ, WQ), jnp.float32)
    k = jax.random.normal(kk, (B, EMBED, HK, WK), jnp.float32)
    v = jax.random.normal(kv, (B, EMBED, HK, WK), jnp.float32)

    params = make_params(kp, EMBED, EMBED, EMBED, EMBED)
    prep = prepare_params(params, n_head=N_HEAD, compute_dtype=jnp.bfloat16)

    # qk_mask: (B, src, 1, tgt) — banded mask over src keys
    qk_mask = jnp.where(
        (jnp.arange(TS)[None, :, None, None] > TQ + jnp.arange(TQ)[None, None, None, :]),
        jnp.float32(-1e4), jnp.float32(0.0))
    qk_mask = jnp.broadcast_to(qk_mask, (B, TS, 1, TQ)).astype(jnp.float32)
    # k_mask: (B, src, 1, 1) — mask the last key position
    k_mask = jnp.where(jnp.arange(TS)[None, :, None, None] == TS - 1,
                       jnp.float32(-1e4), jnp.float32(0.0))
    k_mask = jnp.broadcast_to(k_mask, (B, TS, 1, 1)).astype(jnp.float32)

    rnd = lambda x: x.astype(jnp.bfloat16).astype(jnp.float32)  # noqa: E731
    params_r = {name: rnd(val) for name, val in params.items()}

    # --- masked path (exercises multi-block online softmax) ---
    out = mha_forward(q, k, v, prep, qk_mask, k_mask, n_head=N_HEAD,
                      compute_dtype=jnp.bfloat16, kv_block_len=128)
    out = jax.block_until_ready(out)
    ref = mha_reference(rnd(q), rnd(k), rnd(v), params_r, qk_mask, k_mask,
                        n_head=N_HEAD)
    np.testing.assert_allclose(np.asarray(out).astype(np.float32),
                               np.asarray(ref), rtol=5e-2, atol=5e-2)
    assert out.shape == (B, EMBED, HQ, WQ)

    # --- no-mask specialization (no mask DMA at all) ---
    out_nm = mha_forward(q, k, v, prep, None, None, n_head=N_HEAD,
                         compute_dtype=jnp.bfloat16, kv_block_len=128)
    out_nm = jax.block_until_ready(out_nm)
    ref_nm = mha_reference(rnd(q), rnd(k), rnd(v), params_r, None, None,
                           n_head=N_HEAD)
    np.testing.assert_allclose(np.asarray(out_nm).astype(np.float32),
                               np.asarray(ref_nm), rtol=5e-2, atol=5e-2)

    print("KERNEL_OK")
</pallas_src>

<mosaic_0001>
module attributes {stable_mosaic.version = 11 : i64} {
  func.func @_mha_kernel(%arg0: i32, %arg1: i32, %arg2: memref<1x64x8xbf16, #tpu.memory_space<vmem>>, %arg3: memref<1x64x128xbf16, #tpu.memory_space<vmem>>, %arg4: memref<1x64x128xbf16, #tpu.memory_space<vmem>>, %arg5: memref<64x64xbf16, #tpu.memory_space<vmem>>, %arg6: memref<64x1xf32, #tpu.memory_space<vmem>>, %arg7: memref<64x64xbf16, #tpu.memory_space<vmem>>, %arg8: memref<64x1xf32, #tpu.memory_space<vmem>>, %arg9: memref<64x64xbf16, #tpu.memory_space<vmem>>, %arg10: memref<64x1xf32, #tpu.memory_space<vmem>>, %arg11: memref<64x64xbf16, #tpu.memory_space<vmem>>, %arg12: memref<64x1xf32, #tpu.memory_space<vmem>>, %arg13: memref<1x8x128xf32, #tpu.memory_space<vmem>>, %arg14: memref<1x64x8xbf16, #tpu.memory_space<vmem>>, %arg15: memref<4x16x8xbf16, #tpu.memory_space<vmem>>, %arg16: memref<4x8x1xf32, #tpu.memory_space<vmem>>, %arg17: memref<4x8x1xf32, #tpu.memory_space<vmem>>, %arg18: memref<4x8x16xf32, #tpu.memory_space<vmem>>) attributes {dimension_semantics = [#tpu.dimension_semantics<parallel>, #tpu.dimension_semantics<arbitrary>], iteration_bounds = array<i64: 2, 2>, scalar_prefetch = 0 : i64, scratch_operands = 4 : i64, tpu.core_type = #tpu.core_type<tc>, window_params = [{transform_indices = @transform_0, window_bounds = array<i64: 1, 64, 8>}, {transform_indices = @transform_1, window_bounds = array<i64: 1, 64, 128>}, {transform_indices = @transform_2, window_bounds = array<i64: 1, 64, 128>}, {pipeline_mode = #tpu.pipeline_mode<synchronous>, transform_indices = @transform_3, window_bounds = array<i64: 64, 64>}, {pipeline_mode = #tpu.pipeline_mode<synchronous>, transform_indices = @transform_4, window_bounds = array<i64: 64, 1>}, {pipeline_mode = #tpu.pipeline_mode<synchronous>, transform_indices = @transform_5, window_bounds = array<i64: 64, 64>}, {pipeline_mode = #tpu.pipeline_mode<synchronous>, transform_indices = @transform_6, window_bounds = array<i64: 64, 1>}, {pipeline_mode = #tpu.pipeline_mode<synchronous>, transform_indices = @transform_7, window_bounds = array<i64: 64, 64>}, {pipeline_mode = #tpu.pipeline_mode<synchronous>, transform_indices = @transform_8, window_bounds = array<i64: 64, 1>}, {pipeline_mode = #tpu.pipeline_mode<synchronous>, transform_indices = @transform_9, window_bounds = array<i64: 64, 64>}, {pipeline_mode = #tpu.pipeline_mode<synchronous>, transform_indices = @transform_10, window_bounds = array<i64: 64, 1>}, {transform_indices = @transform_11, window_bounds = array<i64: 1, 8, 128>}, {transform_indices = @transform_12, window_bounds = array<i64: 1, 64, 8>}]} {
    %c0_i32 = arith.constant 0 : i32
    %0 = arith.cmpi eq, %arg1, %c0_i32 : i32
    %1 = arith.extui %0 : i1 to i32
    %c0_i32_0 = arith.constant 0 : i32
    %2 = arith.cmpi ne, %1, %c0_i32_0 : i32
    scf.if %2 {
      %c0_44 = arith.constant 0 : index
      %c0_45 = arith.constant 0 : index
      %54 = vector.load %arg5[%c0_44, %c0_45] : memref<64x64xbf16, #tpu.memory_space<vmem>>, vector<64x64xbf16>
      %c0_46 = arith.constant 0 : index
      %c0_47 = arith.constant 0 : index
      %c0_48 = arith.constant 0 : index
      %55 = vector.load %arg2[%c0_46, %c0_47, %c0_48] : memref<1x64x8xbf16, #tpu.memory_space<vmem>>, vector<1x64x8xbf16>
      %56 = vector.shape_cast %55 : vector<1x64x8xbf16> to vector<64x8xbf16>
      %cst_49 = arith.constant dense<0.000000e+00> : vector<64x8xf32>
      %57 = tpu.matmul %54, %56, %cst_49 {dimension_numbers = #tpu.dot_dimension_numbers<[1], [0], [0], [1], [0, 0, 1, 1], [], []>} : vector<64x64xbf16>, vector<64x8xbf16>, vector<64x8xf32> -> vector<64x8xf32>
      %c0_50 = arith.constant 0 : index
      %c0_51 = arith.constant 0 : index
      %58 = vector.load %arg6[%c0_50, %c0_51] : memref<64x1xf32, #tpu.memory_space<vmem>>, vector<64x1xf32>
      %59 = vector.broadcast %58 : vector<64x1xf32> to vector<64x8xf32>
      %60 = arith.addf %57, %59 : vector<64x8xf32>
      %61 = arith.truncf %60 : vector<64x8xf32> to vector<64x8xbf16>
      %62 = vector.shape_cast %61 : vector<64x8xbf16> to vector<4x16x8xbf16>
      %c0_52 = arith.constant 0 : index
      %c0_53 = arith.constant 0 : index
      %c0_54 = arith.constant 0 : index
      %63 = vector.load %arg15[%c0_52, %c0_53, %c0_54] : memref<4x16x8xbf16, #tpu.memory_space<vmem>>, vector<4x16x8xbf16>
      tpu.vector_store %arg15[%c0_52, %c0_53, %c0_54], %62 {strides = array<i32>} : memref<4x16x8xbf16, #tpu.memory_space<vmem>>, vector<4x16x8xbf16>,
      %cst_55 = arith.constant 0xFF800000 : f32
      %64 = vector.broadcast %cst_55 : f32 to vector<4x8x1xf32>
      %c0_56 = arith.constant 0 : index
      %c0_57 = arith.constant 0 : index
      %c0_58 = arith.constant 0 : index
      %65 = vector.load %arg16[%c0_56, %c0_57, %c0_58] : memref<4x8x1xf32, #tpu.memory_space<vmem>>, vector<4x8x1xf32>
      tpu.vector_store %arg16[%c0_56, %c0_57, %c0_58], %64 {strides = array<i32>} : memref<4x8x1xf32, #tpu.memory_space<vmem>>, vector<4x8x1xf32>,
      %cst_59 = arith.constant 0.000000e+00 : f32
      %66 = vector.broadcast %cst_59 : f32 to vector<4x8x1xf32>
      %c0_60 = arith.constant 0 : index
      %c0_61 = arith.constant 0 : index
      %c0_62 = arith.constant 0 : index
      %67 = vector.load %arg17[%c0_60, %c0_61, %c0_62] : memref<4x8x1xf32, #tpu.memory_space<vmem>>, vector<4x8x1xf32>
      tpu.vector_store %arg17[%c0_60, %c0_61, %c0_62], %66 {strides = array<i32>} : memref<4x8x1xf32, #tpu.memory_space<vmem>>, vector<4x8x1xf32>,
      %cst_63 = arith.constant 0.000000e+00 : f32
      %68 = vector.broadcast %cst_63 : f32 to vector<4x8x16xf32>
      %c0_64 = arith.constant 0 : index
      %c0_65 = arith.constant 0 : index
      %c0_66 = arith.constant 0 : index
      %69 = vector.load %arg18[%c0_64, %c0_65, %c0_66] : memref<4x8x16xf32, #tpu.memory_space<vmem>>, vector<4x8x16xf32>
      tpu.vector_store %arg18[%c0_64, %c0_65, %c0_66], %68 {strides = array<i32>} : memref<4x8x16xf32, #tpu.memory_space<vmem>>, vector<4x8x16xf32>,
    } else {
    }
    %c0 = arith.constant 0 : index
    %c0_1 = arith.constant 0 : index
    %3 = vector.load %arg7[%c0, %c0_1] : memref<64x64xbf16, #tpu.memory_space<vmem>>, vector<64x64xbf16>
    %c0_2 = arith.constant 0 : index
    %c0_3 = arith.constant 0 : index
    %c0_4 = arith.constant 0 : index
    %4 = vector.load %arg3[%c0_2, %c0_3, %c0_4] : memref<1x64x128xbf16, #tpu.memory_space<vmem>>, vector<1x64x128xbf16>
    %5 = vector.shape_cast %4 : vector<1x64x128xbf16> to vector<64x128xbf16>
    %cst = arith.constant dense<0.000000e+00> : vector<64x128xf32>
    %6 = tpu.matmul %3, %5, %cst {dimension_numbers = #tpu.dot_dimension_numbers<[1], [0], [0], [1], [0, 0, 1, 1], [], []>} : vector<64x64xbf16>, vector<64x128xbf16>, vector<64x128xf32> -> vector<64x128xf32>
    %c0_5 = arith.constant 0 : index
    %c0_6 = arith.constant 0 : index
    %7 = vector.load %arg8[%c0_5, %c0_6] : memref<64x1xf32, #tpu.memory_space<vmem>>, vector<64x1xf32>
    %8 = vector.broadcast %7 : vector<64x1xf32> to vector<64x128xf32>
    %9 = arith.addf %6, %8 : vector<64x128xf32>
    %c0_7 = arith.constant 0 : index
    %c0_8 = arith.constant 0 : index
    %10 = vector.load %arg9[%c0_7, %c0_8] : memref<64x64xbf16, #tpu.memory_space<vmem>>, vector<64x64xbf16>
    %c0_9 = arith.constant 0 : index
    %c0_10 = arith.constant 0 : index
    %c0_11 = arith.constant 0 : index
    %11 = vector.load %arg4[%c0_9, %c0_10, %c0_11] : memref<1x64x128xbf16, #tpu.memory_space<vmem>>, vector<1x64x128xbf16>
    %12 = vector.shape_cast %11 : vector<1x64x128xbf16> to vector<64x128xbf16>
    %cst_12 = arith.constant dense<0.000000e+00> : vector<64x128xf32>
    %13 = tpu.matmul %10, %12, %cst_12 {dimension_numbers = #tpu.dot_dimension_numbers<[1], [0], [0], [1], [0, 0, 1, 1], [], []>} : vector<64x64xbf16>, vector<64x128xbf16>, vector<64x128xf32> -> vector<64x128xf32>
    %c0_13 = arith.constant 0 : index
    %c0_14 = arith.constant 0 : index
    %14 = vector.load %arg10[%c0_13, %c0_14] : memref<64x1xf32, #tpu.memory_space<vmem>>, vector<64x1xf32>
    %15 = vector.broadcast %14 : vector<64x1xf32> to vector<64x128xf32>
    %16 = arith.addf %13, %15 : vector<64x128xf32>
    %17 = arith.truncf %9 : vector<64x128xf32> to vector<64x128xbf16>
    %18 = vector.shape_cast %17 : vector<64x128xbf16> to vector<4x16x128xbf16>
    %19 = arith.truncf %16 : vector<64x128xf32> to vector<64x128xbf16>
    %20 = vector.shape_cast %19 : vector<64x128xbf16> to vector<4x16x128xbf16>
    %c0_15 = arith.constant 0 : index
    %c0_16 = arith.constant 0 : index
    %c0_17 = arith.constant 0 : index
    %21 = vector.load %arg15[%c0_15, %c0_16, %c0_17] : memref<4x16x8xbf16, #tpu.memory_space<vmem>>, vector<4x16x8xbf16>
    %cst_18 = arith.constant dense<0.000000e+00> : vector<4x8x128xf32>
    %22 = tpu.matmul %21, %18, %cst_18 {dimension_numbers = #tpu.dot_dimension_numbers<[1], [1], [2], [2], [0, 0, 0, 2, 1, 2], [0], [0]>} : vector<4x16x8xbf16>, vector<4x16x128xbf16>, vector<4x8x128xf32> -> vector<4x8x128xf32>
    %c0_19 = arith.constant 0 : index
    %c0_20 = arith.constant 0 : index
    %c0_21 = arith.constant 0 : index
    %23 = vector.load %arg13[%c0_19, %c0_20, %c0_21] : memref<1x8x128xf32, #tpu.memory_space<vmem>>, vector<1x8x128xf32>
    %24 = vector.shape_cast %23 : vector<1x8x128xf32> to vector<8x128xf32>
    %25 = vector.shape_cast %24 : vector<8x128xf32> to vector<1x8x128xf32>
    %26 = vector.broadcast %25 : vector<1x8x128xf32> to vector<4x8x128xf32>
    %27 = arith.addf %22, %26 : vector<4x8x128xf32>
    %c0_22 = arith.constant 0 : index
    %c0_23 = arith.constant 0 : index
    %c0_24 = arith.constant 0 : index
    %28 = vector.load %arg16[%c0_22, %c0_23, %c0_24] : memref<4x8x1xf32, #tpu.memory_space<vmem>>, vector<4x8x1xf32>
    %cst_25 = arith.constant dense<0xFF800000> : vector<4x8xf32>
    %29 = vector.multi_reduction <maximumf>, %27, %cst_25 [2] : vector<4x8x128xf32> to vector<4x8xf32>
    %30 = vector.shape_cast %29 : vector<4x8xf32> to vector<4x8x1xf32>
    %31 = arith.maximumf %28, %30 : vector<4x8x1xf32>
    %32 = arith.subf %28, %31 : vector<4x8x1xf32>
    %33 = math.exp %32 : vector<4x8x1xf32>
    %34 = vector.broadcast %31 : vector<4x8x1xf32> to vector<4x8x128xf32>
    %35 = arith.subf %27, %34 : vector<4x8x128xf32>
    %36 = math.exp %35 : vector<4x8x128xf32>
    %c0_26 = arith.constant 0 : index
    %c0_27 = arith.constant 0 : index
    %c0_28 = arith.constant 0 : index
    %37 = vector.load %arg17[%c0_26, %c0_27, %c0_28] : memref<4x8x1xf32, #tpu.memory_space<vmem>>, vector<4x8x1xf32>
    %38 = arith.mulf %33, %37 : vector<4x8x1xf32>
    %cst_29 = arith.constant dense<0.000000e+00> : vector<4x8xf32>
    %39 = vector.multi_reduction <add>, %36, %cst_29 [2] : vector<4x8x128xf32> to vector<4x8xf32>
    %40 = vector.shape_cast %39 : vector<4x8xf32> to vector<4x8x1xf32>
    %41 = arith.addf %38, %40 : vector<4x8x1xf32>
    %c0_30 = arith.constant 0 : index
    %c0_31 = arith.constant 0 : index
    %c0_32 = arith.constant 0 : index
    %42 = vector.load %arg17[%c0_30, %c0_31, %c0_32] : memref<4x8x1xf32, #tpu.memory_space<vmem>>, vector<4x8x1xf32>
    tpu.vector_store %arg17[%c0_30, %c0_31, %c0_32], %41 {strides = array<i32>} : memref<4x8x1xf32, #tpu.memory_space<vmem>>, vector<4x8x1xf32>,
    %43 = arith.truncf %36 : vector<4x8x128xf32> to vector<4x8x128xbf16>
    %cst_33 = arith.constant dense<0.000000e+00> : vector<4x8x16xf32>
    %44 = tpu.matmul %43, %20, %cst_33 {dimension_numbers = #tpu.dot_dimension_numbers<[2], [2], [1], [1], [0, 0, 0, 1, 1, 1], [0], [0]>} : vector<4x8x128xbf16>, vector<4x16x128xbf16>, vector<4x8x16xf32> -> vector<4x8x16xf32>
    %c0_34 = arith.constant 0 : index
    %c0_35 = arith.constant 0 : index
    %c0_36 = arith.constant 0 : index
    %45 = vector.load %arg18[%c0_34, %c0_35, %c0_36] : memref<4x8x16xf32, #tpu.memory_space<vmem>>, vector<4x8x16xf32>
    %46 = vector.broadcast %33 : vector<4x8x1xf32> to vector<4x8x16xf32>
    %47 = arith.mulf %46, %45 : vector<4x8x16xf32>
    %48 = arith.addf %47, %44 : vector<4x8x16xf32>
    %c0_37 = arith.constant 0 : index
    %c0_38 = arith.constant 0 : index
    %c0_39 = arith.constant 0 : index
    %49 = vector.load %arg18[%c0_37, %c0_38, %c0_39] : memref<4x8x16xf32, #tpu.memory_space<vmem>>, vector<4x8x16xf32>
    tpu.vector_store %arg18[%c0_37, %c0_38, %c0_39], %48 {strides = array<i32>} : memref<4x8x16xf32, #tpu.memory_space<vmem>>, vector<4x8x16xf32>,
    %c0_40 = arith.constant 0 : index
    %c0_41 = arith.constant 0 : index
    %c0_42 = arith.constant 0 : index
    %50 = vector.load %arg16[%c0_40, %c0_41, %c0_42] : memref<4x8x1xf32, #tpu.memory_space<vmem>>, vector<4x8x1xf32>
    tpu.vector_store %arg16[%c0_40, %c0_41, %c0_42], %31 {strides = array<i32>} : memref<4x8x1xf32, #tpu.memory_space<vmem>>, vector<4x8x1xf32>,
    %c1_i32 = arith.constant 1 : i32
    %51 = arith.cmpi eq, %arg1, %c1_i32 : i32
    %52 = arith.extui %51 : i1 to i32
    %c0_i32_43 = arith.constant 0 : i32
    %53 = arith.cmpi ne, %52, %c0_i32_43 : i32
    scf.if %53 {
      %c0_44 = arith.constant 0 : index
      %c0_45 = arith.constant 0 : index
      %c0_46 = arith.constant 0 : index
      %54 = vector.load %arg17[%c0_44, %c0_45, %c0_46] : memref<4x8x1xf32, #tpu.memory_space<vmem>>, vector<4x8x1xf32>
      %55 = tpu.reciprocal %54 {approx = true} : vector<4x8x1xf32> -> vector<4x8x1xf32>
      %c0_47 = arith.constant 0 : index
      %c0_48 = arith.constant 0 : index
      %c0_49 = arith.constant 0 : index
      %56 = vector.load %arg18[%c0_47, %c0_48, %c0_49] : memref<4x8x16xf32, #tpu.memory_space<vmem>>, vector<4x8x16xf32>
      %57 = vector.broadcast %55 : vector<4x8x1xf32> to vector<4x8x16xf32>
      %58 = arith.mulf %56, %57 : vector<4x8x16xf32>
      %59 = arith.truncf %58 : vector<4x8x16xf32> to vector<4x8x16xbf16>
      %60 = tpu.transpose %59, [0, 2, 1] : vector<4x8x16xbf16> -> vector<4x16x8xbf16>
      %61 = vector.shape_cast %60 : vector<4x16x8xbf16> to vector<64x8xbf16>
      %c0_50 = arith.constant 0 : index
      %c0_51 = arith.constant 0 : index
      %62 = vector.load %arg11[%c0_50, %c0_51] : memref<64x64xbf16, #tpu.memory_space<vmem>>, vector<64x64xbf16>
      %cst_52 = arith.constant dense<0.000000e+00> : vector<64x8xf32>
      %63 = tpu.matmul %62, %61, %cst_52 {dimension_numbers = #tpu.dot_dimension_numbers<[1], [0], [0], [1], [0, 0, 1, 1], [], []>} : vector<64x64xbf16>, vector<64x8xbf16>, vector<64x8xf32> -> vector<64x8xf32>
      %c0_53 = arith.constant 0 : index
      %c0_54 = arith.constant 0 : index
      %64 = vector.load %arg12[%c0_53, %c0_54] : memref<64x1xf32, #tpu.memory_space<vmem>>, vector<64x1xf32>
      %65 = vector.broadcast %64 : vector<64x1xf32> to vector<64x8xf32>
      %66 = arith.addf %63, %65 : vector<64x8xf32>
      %67 = arith.truncf %66 : vector<64x8xf32> to vector<64x8xbf16>
      %c0_55 = arith.constant 0 : index
      %c0_56 = arith.constant 0 : index
      %c0_57 = arith.constant 0 : index
      %68 = vector.load %arg14[%c0_55, %c0_56, %c0_57] : memref<1x64x8xbf16, #tpu.memory_space<vmem>>, vector<1x64x8xbf16>
      %69 = vector.shape_cast %68 : vector<1x64x8xbf16> to vector<64x8xbf16>
      %70 = vector.shape_cast %67 : vector<64x8xbf16> to vector<1x64x8xbf16>
      tpu.vector_store %arg14[%c0_55, %c0_56, %c0_57], %70 {strides = array<i32>} : memref<1x64x8xbf16, #tpu.memory_space<vmem>>, vector<1x64x8xbf16>,
    } else {
    }
    return
  }
  func.func @transform_0(%arg0: i32, %arg1: i32) -> (i32, i32, i32) {
    %c0_i32 = arith.constant 0 : i32
    %c0_i32_0 = arith.constant 0 : i32
    %c0_i32_1 = arith.constant 0 : i32
    return %arg0, %c0_i32, %c0_i32_0 : i32, i32, i32
  }
  func.func @transform_1(%arg0: i32, %arg1: i32) -> (i32, i32, i32) {
    %c0_i32 = arith.constant 0 : i32
    %c0_i32_0 = arith.constant 0 : i32
    return %arg0, %c0_i32, %arg1 : i32, i32, i32
  }
  func.func @transform_2(%arg0: i32, %arg1: i32) -> (i32, i32, i32) {
    %c0_i32 = arith.constant 0 : i32
    %c0_i32_0 = arith.constant 0 : i32
    return %arg0, %c0_i32, %arg1 : i32, i32, i32
  }
  func.func @transform_3(%arg0: i32, %arg1: i32) -> (i32, i32) {
    %c0_i32 = arith.constant 0 : i32
    %c0_i32_0 = arith.constant 0 : i32
    %c0_i32_1 = arith.constant 0 : i32
    return %c0_i32, %c0_i32_0 : i32, i32
  }
  func.func @transform_4(%arg0: i32, %arg1: i32) -> (i32, i32) {
    %c0_i32 = arith.constant 0 : i32
    %c0_i32_0 = arith.constant 0 : i32
    %c0_i32_1 = arith.constant 0 : i32
    return %c0_i32, %c0_i32_0 : i32, i32
  }
  func.func @transform_5(%arg0: i32, %arg1: i32) -> (i32, i32) {
    %c0_i32 = arith.constant 0 : i32
    %c0_i32_0 = arith.constant 0 : i32
    %c0_i32_1 = arith.constant 0 : i32
    return %c0_i32, %c0_i32_0 : i32, i32
  }
  func.func @transform_6(%arg0: i32, %arg1: i32) -> (i32, i32) {
    %c0_i32 = arith.constant 0 : i32
    %c0_i32_0 = arith.constant 0 : i32
    %c0_i32_1 = arith.constant 0 : i32
    return %c0_i32, %c0_i32_0 : i32, i32
  }
  func.func @transform_7(%arg0: i32, %arg1: i32) -> (i32, i32) {
    %c0_i32 = arith.constant 0 : i32
    %c0_i32_0 = arith.constant 0 : i32
    %c0_i32_1 = arith.constant 0 : i32
    return %c0_i32, %c0_i32_0 : i32, i32
  }
  func.func @transform_8(%arg0: i32, %arg1: i32) -> (i32, i32) {
    %c0_i32 = arith.constant 0 : i32
    %c0_i32_0 = arith.constant 0 : i32
    %c0_i32_1 = arith.constant 0 : i32
    return %c0_i32, %c0_i32_0 : i32, i32
  }
  func.func @transform_9(%arg0: i32, %arg1: i32) -> (i32, i32) {
    %c0_i32 = arith.constant 0 : i32
    %c0_i32_0 = arith.constant 0 : i32
    %c0_i32_1 = arith.constant 0 : i32
    return %c0_i32, %c0_i32_0 : i32, i32
  }
  func.func @transform_10(%arg0: i32, %arg1: i32) -> (i32, i32) {
    %c0_i32 = arith.constant 0 : i32
    %c0_i32_0 = arith.constant 0 : i32
    %c0_i32_1 = arith.constant 0 : i32
    return %c0_i32, %c0_i32_0 : i32, i32
  }
  func.func @transform_11(%arg0: i32, %arg1: i32) -> (i32, i32, i32) {
    %c0_i32 = arith.constant 0 : i32
    %c0_i32_0 = arith.constant 0 : i32
    return %arg0, %c0_i32, %arg1 : i32, i32, i32
  }
  func.func @transform_12(%arg0: i32, %arg1: i32) -> (i32, i32, i32) {
    %c0_i32 = arith.constant 0 : i32
    %c0_i32_0 = arith.constant 0 : i32
    %c0_i32_1 = arith.constant 0 : i32
    return %arg0, %c0_i32, %c0_i32_0 : i32, i32, i32
  }
}

</mosaic_0001>

<llo_original>
// kernel: tpu_custom_call.1
$region0: #{tpu_custom_call.1}
  #allocation0 [shape = 'u32[]', space=smem, size = 0x4, offset = 0x4, fixed_abs, tag = 'smem constant byte address 0x4 - core index']
  #allocation1 [shape = 'u32[144,128]{1,0:T(1,128)}', space=vmem, size = 0x12000, scoped, tag = 'internal scratch']
  #allocation2 [shape = 'bf16[4,16,8]{2,1,0:T(16,128)(2,1)}', space=vmem, size = 0x4000, scoped, tag = 'scratch operand']
  #allocation3 [shape = 'f32[4,8,1]{2,1,0:T(8,128)}', space=vmem, size = 0x4000, scoped, tag = 'scratch operand']
  #allocation4 [shape = 'f32[4,8,1]{2,1,0:T(8,128)}', space=vmem, size = 0x4000, scoped, tag = 'scratch operand']
  #allocation5 [shape = 'f32[4,8,16]{2,1,0:T(8,128)}', space=vmem, size = 0x4000, scoped, tag = 'scratch operand']
  %s0 = inlined_call_operand.vmem [shape: bf16[2,64,8], index: 0, kind: input, shape index: {}]
  %s1 = inlined_call_operand.vmem [shape: bf16[2,64,256], index: 1, kind: input, shape index: {}]
  %s2 = inlined_call_operand.vmem [shape: bf16[2,64,256], index: 2, kind: input, shape index: {}]
  %s3 = inlined_call_operand.vmem [shape: bf16[64,64], index: 3, kind: input, shape index: {}]
  %s4 = inlined_call_operand.vmem [shape: f32[64,1], index: 4, kind: input, shape index: {}]
  %s5 = inlined_call_operand.vmem [shape: bf16[64,64], index: 5, kind: input, shape index: {}]
  %s6 = inlined_call_operand.vmem [shape: f32[64,1], index: 6, kind: input, shape index: {}]
  %s7 = inlined_call_operand.vmem [shape: bf16[64,64], index: 7, kind: input, shape index: {}]
  %s8 = inlined_call_operand.vmem [shape: f32[64,1], index: 8, kind: input, shape index: {}]
  %s9 = inlined_call_operand.hbm [shape: bf16[64,64], index: 9, kind: input, shape index: {}]
  %s10 = inlined_call_operand.vmem [shape: f32[64,1], index: 10, kind: input, shape index: {}]
  %s11 = inlined_call_operand.hbm [shape: f32[2,8,256], index: 11, kind: input, shape index: {}]
  %s12 = inlined_call_operand.vmem [shape: bf16[2,64,8], index: 12, kind: output, shape index: {}]
  %s13 = sld [smem:[#allocation0]]
  $region179: #{tpu_custom_call.1} parent=0
    _
  %s15 = ssub.s32 1, %s13
  %s16 = scalar_select 0, %s15, %s13
  $region1: #{tpu_custom_call.1} parent=0
    #allocation6 [shape = 'u8[32768]{0}', space=vmem, size = 0x8000, scoped, tag = 'input window, operand 1']
    #allocation7 [shape = 'u8[32768]{0}', space=vmem, size = 0x8000, scoped, tag = 'input window, operand 2']
    #allocation8 [shape = 'u8[16384]{0}', space=vmem, size = 0x4000, scoped, tag = 'input window, operand 9, single buffered']
    #allocation9 [shape = 's32[2]{0}', space=sflag, size = 0x8, scoped, tag = 'scoped memory for tpu_custom_call.1']
    #allocation10 [shape = 'u8[8192]{0}', space=vmem, size = 0x2000, scoped, tag = 'input window, operand 11']
    #allocation11 [shape = 's32[2]{0}', space=sflag, size = 0x8, scoped, tag = 'scoped memory for tpu_custom_call.1']
    %17 = vsyncpa [#allocation9], 0
    %18 = vsyncpa [#allocation11], 0
    %s19 = scalar_lea.sflag [#allocation11], 1
    %20 = vsyncpa %s19, 0
    loop: start=0, step=1, limit=6
    $region2: #{tpu_custom_call.1} parent=1 // loop_pre_header
      _
    $region3: #{tpu_custom_call.1} parent=1 // loop_header
      %s22 = sphi 0, %s26
      %p23 = scmp.ge.s32.totalorder %s22, 6
      %s29 = sphi 0, %s41
      %s30 = sphi 0, %s37
      %s31 = sphi 0, %s29
      %s32 = sphi 0, %s30
      %s33 = sphi 0, %s31
      %s34 = sphi 0, %s32
      %s44 = sphi 0, %s46
      %s47 = sphi 0, %s44
      %s48 = sphi 0, %s47
      %s64 = sphi 0, %s48
      %s72 = sphi 0, %s74
      %s75 = sphi 0, %s72
      %s76 = sphi 0, %s75
      %s92 = sphi 0, %s76
      %s100 = sphi 0, %s102
      %s103 = sphi 0, %s100
      %s104 = sphi 0, %s103
      %s120 = sphi 0, %s104
      %s124 = sphi 0, %s124
      %s126 = sphi 0, %s124
      %s127 = sphi 0, %s126
      %s141 = sphi 0, %s127
      %s145 = sphi 0, %s145
      %s147 = sphi 0, %s145
      %s148 = sphi 0, %s147
      %s162 = sphi 0, %s148
      %s166 = sphi 0, %s166
      %s168 = sphi 0, %s166
      %s169 = sphi 0, %s168
      %s183 = sphi 0, %s169
      %s187 = sphi 0, %s187
      %s189 = sphi 0, %s187
      %s190 = sphi 0, %s189
      %s204 = sphi 0, %s190
      %s208 = sphi 0, %s208
      %s210 = sphi 0, %s208
      %s211 = sphi 0, %s210
      %s225 = sphi 0, %s211
      %s229 = sphi 0, %s229
      %s231 = sphi 0, %s229
      %s232 = sphi 0, %s231
      %s246 = sphi 0, %s232
      %s250 = sphi 0, %s250
      %s252 = sphi 0, %s250
      %s253 = sphi 0, %s252
      %s267 = sphi 0, %s253
      %s271 = sphi 0, %s271
      %s273 = sphi 0, %s271
      %s274 = sphi 0, %s273
      %s288 = sphi 0, %s274
      %s296 = sphi 0, %s298
      %s299 = sphi 0, %s296
      %s300 = sphi 0, %s299
      %s316 = sphi 0, %s300
      %s322 = sphi 0, %s324
      %s325 = sphi 0, %s322
      %s326 = sphi 0, %s325
      %s342 = sphi 0, %s326
    $region4: #{tpu_custom_call.1} parent=1 // loop_header_branch
      %25 = sbr.rel (%p23) target = $region8
    $region5: #{tpu_custom_call.1} parent=1 // loop_body
      %s27 = ssub.s32 %s22, 1
      %s28 = ssub.s32 %s22, 2
      %s35 = sadd.s32 1, %s30
      %p36 = scmp.ge.s32.totalorder %s35, 2
      %s37 = scalar_select %p36, 0, %s35
      %s38 = sadd.s32 1, %s29
      %s39 = scalar_select %p36, %s38, %s29
      %p40 = scmp.ge.s32.totalorder %s39, 2
      %s41 = scalar_select %p40, 0, %s39
      %s42 = ssub.s32 %s29, %s41
      %p43 = scmp.eq.s32.totalorder %s42, 0
      %s45 = sadd.s32 %s44, 1
      %s46 = scalar_select %p43, %s44, %s45
      %p49 = pneg %p43
      %p50 = scmp.eq.s32.totalorder %s22, 3
      %p51 = por %p49, %p50
      %p52 = scmp.ne.s32.totalorder %s44, %s47
      %p53 = scmp.eq.s32.totalorder %s22, 0
      %p54 = por %p52, %p53
      %p55 = scmp.ne.s32.totalorder %s44, %s47
      %p56 = scmp.eq.s32.totalorder %s27, 3
      %p57 = por %p55, %p56
      %p58 = scmp.ne.s32.totalorder %s47, %s48
      %p59 = scmp.eq.s32.totalorder %s27, 0
      %p60 = por %p58, %p59
      %p61 = scmp.ne.s32.totalorder %s47, %s48
      %p62 = scmp.eq.s32.totalorder %s28, 3
      %p63 = por %p61, %p62
      %p65 = scmp.ne.s32.totalorder %s48, %s64
      %p66 = scmp.eq.s32.totalorder %s28, 0
      %p67 = por %p65, %p66
      %s68 = ssub.s32 %s29, %s41
      %s69 = ssub.s32 %s30, %s37
      %s70 = sor.u32 %s68, %s69
      %p71 = scmp.eq.s32.totalorder %s70, 0
      %s73 = sadd.s32 %s72, 1
      %s74 = scalar_select %p71, %s72, %s73
      %p77 = pneg %p71
      %p78 = scmp.eq.s32.totalorder %s22, 3
      %p79 = por %p77, %p78
      %p80 = scmp.ne.s32.totalorder %s72, %s75
      %p81 = scmp.eq.s32.totalorder %s22, 0
      %p82 = por %p80, %p81
      %p83 = scmp.ne.s32.totalorder %s72, %s75
      %p84 = scmp.eq.s32.totalorder %s27, 3
      %p85 = por %p83, %p84
      %p86 = scmp.ne.s32.totalorder %s75, %s76
      %p87 = scmp.eq.s32.totalorder %s27, 0
      %p88 = por %p86, %p87
      %p89 = scmp.ne.s32.totalorder %s75, %s76
      %p90 = scmp.eq.s32.totalorder %s28, 3
      %p91 = por %p89, %p90
      %p93 = scmp.ne.s32.totalorder %s76, %s92
      %p94 = scmp.eq.s32.totalorder %s28, 0
      %p95 = por %p93, %p94
      %s96 = ssub.s32 %s29, %s41
      %s97 = ssub.s32 %s30, %s37
      %s98 = sor.u32 %s96, %s97
      %p99 = scmp.eq.s32.totalorder %s98, 0
      %s101 = sadd.s32 %s100, 1
      %s102 = scalar_select %p99, %s100, %s101
      %p105 = pneg %p99
      %p106 = scmp.eq.s32.totalorder %s22, 3
      %p107 = por %p105, %p106
      %p108 = scmp.ne.s32.totalorder %s100, %s103
      %p109 = scmp.eq.s32.totalorder %s22, 0
      %p110 = por %p108, %p109
      %p111 = scmp.ne.s32.totalorder %s100, %s103
      %p112 = scmp.eq.s32.totalorder %s27, 3
      %p113 = por %p111, %p112
      %p114 = scmp.ne.s32.totalorder %s103, %s104
      %p115 = scmp.eq.s32.totalorder %s27, 0
      %p116 = por %p114, %p115
      %p117 = scmp.ne.s32.totalorder %s103, %s104
      %p118 = scmp.eq.s32.totalorder %s28, 3
      %p119 = por %p117, %p118
      %p121 = scmp.ne.s32.totalorder %s104, %s120
      %p122 = scmp.eq.s32.totalorder %s28, 0
      %p123 = por %p121, %p122
      %s125 = sadd.s32 %s124, 1
      %p128 = scmp.eq.s32.totalorder %s22, 3
      %p129 = scmp.ne.s32.totalorder %s124, %s126
      %p130 = scmp.eq.s32.totalorder %s22, 0
      %p131 = por %p129, %p130
      %p132 = scmp.ne.s32.totalorder %s124, %s126
      %p133 = scmp.eq.s32.totalorder %s27, 3
      %p134 = por %p132, %p133
      %p135 = scmp.ne.s32.totalorder %s126, %s127
      %p136 = scmp.eq.s32.totalorder %s27, 0
      %p137 = por %p135, %p136
      %p138 = scmp.ne.s32.totalorder %s126, %s127
      %p139 = scmp.eq.s32.totalorder %s28, 3
      %p140 = por %p138, %p139
      %p142 = scmp.ne.s32.totalorder %s127, %s141
      %p143 = scmp.eq.s32.totalorder %s28, 0
      %p144 = por %p142, %p143
      %s146 = sadd.s32 %s145, 1
      %p149 = scmp.eq.s32.totalorder %s22, 3
      %p150 = scmp.ne.s32.totalorder %s145, %s147
      %p151 = scmp.eq.s32.totalorder %s22, 0
      %p152 = por %p150, %p151
      %p153 = scmp.ne.s32.totalorder %s145, %s147
      %p154 = scmp.eq.s32.totalorder %s27, 3
      %p155 = por %p153, %p154
      %p156 = scmp.ne.s32.totalorder %s147, %s148
      %p157 = scmp.eq.s32.totalorder %s27, 0
      %p158 = por %p156, %p157
      %p159 = scmp.ne.s32.totalorder %s147, %s148
      %p160 = scmp.eq.s32.totalorder %s28, 3
      %p161 = por %p159, %p160
      %p163 = scmp.ne.s32.totalorder %s148, %s162
      %p164 = scmp.eq.s32.totalorder %s28, 0
      %p165 = por %p163, %p164
      %s167 = sadd.s32 %s166, 1
      %p170 = scmp.eq.s32.totalorder %s22, 3
      %p171 = scmp.ne.s32.totalorder %s166, %s168
      %p172 = scmp.eq.s32.totalorder %s22, 0
      %p173 = por %p171, %p172
      %p174 = scmp.ne.s32.totalorder %s166, %s168
      %p175 = scmp.eq.s32.totalorder %s27, 3
      %p176 = por %p174, %p175
      %p177 = scmp.ne.s32.totalorder %s168, %s169
      %p178 = scmp.eq.s32.totalorder %s27, 0
      %p179 = por %p177, %p178
      %p180 = scmp.ne.s32.totalorder %s168, %s169
      %p181 = scmp.eq.s32.totalorder %s28, 3
      %p182 = por %p180, %p181
      %p184 = scmp.ne.s32.totalorder %s169, %s183
      %p185 = scmp.eq.s32.totalorder %s28, 0
      %p186 = por %p184, %p185
      %s188 = sadd.s32 %s187, 1
      %p191 = scmp.eq.s32.totalorder %s22, 3
      %p192 = scmp.ne.s32.totalorder %s187, %s189
      %p193 = scmp.eq.s32.totalorder %s22, 0
      %p194 = por %p192, %p193
      %p195 = scmp.ne.s32.totalorder %s187, %s189
      %p196 = scmp.eq.s32.totalorder %s27, 3
      %p197 = por %p195, %p196
      %p198 = scmp.ne.s32.totalorder %s189, %s190
      %p199 = scmp.eq.s32.totalorder %s27, 0
      %p200 = por %p198, %p199
      %p201 = scmp.ne.s32.totalorder %s189, %s190
      %p202 = scmp.eq.s32.totalorder %s28, 3
      %p203 = por %p201, %p202
      %p205 = scmp.ne.s32.totalorder %s190, %s204
      %p206 = scmp.eq.s32.totalorder %s28, 0
      %p207 = por %p205, %p206
      %s209 = sadd.s32 %s208, 1
      %p212 = scmp.eq.s32.totalorder %s22, 3
      %p213 = scmp.ne.s32.totalorder %s208, %s210
      %p214 = scmp.eq.s32.totalorder %s22, 0
      %p215 = por %p213, %p214
      %p216 = scmp.ne.s32.totalorder %s208, %s210
      %p217 = scmp.eq.s32.totalorder %s27, 3
      %p218 = por %p216, %p217
      %p219 = scmp.ne.s32.totalorder %s210, %s211
      %p220 = scmp.eq.s32.totalorder %s27, 0
      %p221 = por %p219, %p220
      %p222 = scmp.ne.s32.totalorder %s210, %s211
      %p223 = scmp.eq.s32.totalorder %s28, 3
      %p224 = por %p222, %p223
      %p226 = scmp.ne.s32.totalorder %s211, %s225
      %p227 = scmp.eq.s32.totalorder %s28, 0
      %p228 = por %p226, %p227
      %s230 = sadd.s32 %s229, 1
      %p233 = scmp.eq.s32.totalorder %s22, 3
      %p234 = scmp.ne.s32.totalorder %s229, %s231
      %p235 = scmp.eq.s32.totalorder %s22, 0
      %p236 = por %p234, %p235
      %p237 = scmp.ne.s32.totalorder %s229, %s231
      %p238 = scmp.eq.s32.totalorder %s27, 3
      %p239 = por %p237, %p238
      %p240 = scmp.ne.s32.totalorder %s231, %s232
      %p241 = scmp.eq.s32.totalorder %s27, 0
      %p242 = por %p240, %p241
      %p243 = scmp.ne.s32.totalorder %s231, %s232
      %p244 = scmp.eq.s32.totalorder %s28, 3
      %p245 = por %p243, %p244
      %p247 = scmp.ne.s32.totalorder %s232, %s246
      %p248 = scmp.eq.s32.totalorder %s28, 0
      %p249 = por %p247, %p248
      %s251 = sadd.s32 %s250, 1
      %p254 = scmp.eq.s32.totalorder %s22, 3
      %p255 = scmp.ne.s32.totalorder %s250, %s252
      %p256 = scmp.eq.s32.totalorder %s22, 0
      %p257 = por %p255, %p256
      %p258 = scmp.ne.s32.totalorder %s250, %s252
      %p259 = scmp.eq.s32.totalorder %s27, 3
      %p260 = por %p258, %p259
      %p261 = scmp.ne.s32.totalorder %s252, %s253
      %p262 = scmp.eq.s32.totalorder %s27, 0
      %p263 = por %p261, %p262
      %p264 = scmp.ne.s32.totalorder %s252, %s253
      %p265 = scmp.eq.s32.totalorder %s28, 3
      %p266 = por %p264, %p265
      %p268 = scmp.ne.s32.totalorder %s253, %s267
      %p269 = scmp.eq.s32.totalorder %s28, 0
      %p270 = por %p268, %p269
      %s272 = sadd.s32 %s271, 1
      %p275 = scmp.eq.s32.totalorder %s22, 3
      %p276 = scmp.ne.s32.totalorder %s271, %s273
      %p277 = scmp.eq.s32.totalorder %s22, 0
      %p278 = por %p276, %p277
      %p279 = scmp.ne.s32.totalorder %s271, %s273
      %p280 = scmp.eq.s32.totalorder %s27, 3
      %p281 = por %p279, %p280
      %p282 = scmp.ne.s32.totalorder %s273, %s274
      %p283 = scmp.eq.s32.totalorder %s27, 0
      %p284 = por %p282, %p283
      %p285 = scmp.ne.s32.totalorder %s273, %s274
      %p286 = scmp.eq.s32.totalorder %s28, 3
      %p287 = por %p285, %p286
      %p289 = scmp.ne.s32.totalorder %s274, %s288
      %p290 = scmp.eq.s32.totalorder %s28, 0
      %p291 = por %p289, %p290
      %s292 = ssub.s32 %s29, %s41
      %s293 = ssub.s32 %s30, %s37
      %s294 = sor.u32 %s292, %s293
      %p295 = scmp.eq.s32.totalorder %s294, 0
      %s297 = sadd.s32 %s296, 1
      %s298 = scalar_select %p295, %s296, %s297
      %p301 = pneg %p295
      %p302 = scmp.eq.s32.totalorder %s22, 3
      %p303 = por %p301, %p302
      %p304 = scmp.ne.s32.totalorder %s296, %s299
      %p305 = scmp.eq.s32.totalorder %s22, 0
      %p306 = por %p304, %p305
      %p307 = scmp.ne.s32.totalorder %s296, %s299
      %p308 = scmp.eq.s32.totalorder %s27, 3
      %p309 = por %p307, %p308
      %p310 = scmp.ne.s32.totalorder %s299, %s300
      %p311 = scmp.eq.s32.totalorder %s27, 0
      %p312 = por %p310, %p311
      %p313 = scmp.ne.s32.totalorder %s299, %s300
      %p314 = scmp.eq.s32.totalorder %s28, 3
      %p315 = por %p313, %p314
      %p317 = scmp.ne.s32.totalorder %s300, %s316
      %p318 = scmp.eq.s32.totalorder %s28, 0
      %p319 = por %p317, %p318
      %s320 = ssub.s32 %s29, %s41
      %p321 = scmp.eq.s32.totalorder %s320, 0
      %s323 = sadd.s32 %s322, 1
      %s324 = scalar_select %p321, %s322, %s323
      %p327 = pneg %p321
      %p328 = scmp.eq.s32.totalorder %s22, 3
      %p329 = por %p327, %p328
      %p330 = scmp.ne.s32.totalorder %s322, %s325
      %p331 = scmp.eq.s32.totalorder %s22, 0
      %p332 = por %p330, %p331
      %p333 = scmp.ne.s32.totalorder %s322, %s325
      %p334 = scmp.eq.s32.totalorder %s27, 3
      %p335 = por %p333, %p334
      %p336 = scmp.ne.s32.totalorder %s325, %s326
      %p337 = scmp.eq.s32.totalorder %s27, 0
      %p338 = por %p336, %p337
      %p339 = scmp.ne.s32.totalorder %s325, %s326
      %p340 = scmp.eq.s32.totalorder %s28, 3
      %p341 = por %p339, %p340
      %p343 = scmp.ne.s32.totalorder %s326, %s342
      %p344 = scmp.eq.s32.totalorder %s28, 0
      %p345 = por %p343, %p344
      %p346 = scmp.le.s32.totalorder 1, %s22
      %p347 = scmp.lt.s32.totalorder %s22, 5
      %p348 = pnand %p346, %p347
      %p349 = pneg %p348
      // Predicated region
      $region9: #{tpu_custom_call.1} parent=5 // pred_check
        _
      $region10: #{tpu_custom_call.1} parent=5 // pred_check_branch
        %351 = sbr.rel (%p348) target = $region12
      $region11: #{tpu_custom_call.1} parent=5 // pred_region
        %s352 = ssub.s32 %s22, 1
        // Predicated region
        $region13: #{tpu_custom_call.1} parent=11 // pred_check
          %p353 = pneg %p137
        $region14: #{tpu_custom_call.1} parent=11 // pred_check_branch
          %355 = sbr.rel (%p353) target = $region16
        $region15: #{tpu_custom_call.1} parent=11 // pred_region
          _
        $region16: #{tpu_custom_call.1} parent=11 // pred_fallthru
          _
        // Predicated region
        $region17: #{tpu_custom_call.1} parent=11 // pred_check
          %p356 = pneg %p158
        $region18: #{tpu_custom_call.1} parent=11 // pred_check_branch
          %358 = sbr.rel (%p356) target = $region20
        $region19: #{tpu_custom_call.1} parent=11 // pred_region
          _
        $region20: #{tpu_custom_call.1} parent=11 // pred_fallthru
          _
        // Predicated region
        $region21: #{tpu_custom_call.1} parent=11 // pred_check
          %p359 = pneg %p179
        $region22: #{tpu_custom_call.1} parent=11 // pred_check_branch
          %361 = sbr.rel (%p359) target = $region24
        $region23: #{tpu_custom_call.1} parent=11 // pred_region
          _
        $region24: #{tpu_custom_call.1} parent=11 // pred_fallthru
          _
        // Predicated region
        $region25: #{tpu_custom_call.1} parent=11 // pred_check
          %p362 = pneg %p200
        $region26: #{tpu_custom_call.1} parent=11 // pred_check_branch
          %364 = sbr.rel (%p362) target = $region28
        $region27: #{tpu_custom_call.1} parent=11 // pred_region
          _
        $region28: #{tpu_custom_call.1} parent=11 // pred_fallthru
          _
        // Predicated region
        $region29: #{tpu_custom_call.1} parent=11 // pred_check
          %p365 = pneg %p221
        $region30: #{tpu_custom_call.1} parent=11 // pred_check_branch
          %367 = sbr.rel (%p365) target = $region32
        $region31: #{tpu_custom_call.1} parent=11 // pred_region
          _
        $region32: #{tpu_custom_call.1} parent=11 // pred_fallthru
          _
        // Predicated region
        $region33: #{tpu_custom_call.1} parent=11 // pred_check
          %p368 = pneg %p242
        $region34: #{tpu_custom_call.1} parent=11 // pred_check_branch
          %370 = sbr.rel (%p368) target = $region36
        $region35: #{tpu_custom_call.1} parent=11 // pred_region
          _
        $region36: #{tpu_custom_call.1} parent=11 // pred_fallthru
          _
        // Predicated region
        $region37: #{tpu_custom_call.1} parent=11 // pred_check
          %p371 = pneg %p263
        $region38: #{tpu_custom_call.1} parent=11 // pred_check_branch
          %373 = sbr.rel (%p371) target = $region40
        $region39: #{tpu_custom_call.1} parent=11 // pred_region
          %s375 = ssub.s32 512, 512
          %376 = vsyncadd [#allocation9], %s375
          %s377 = sshll.u32 [#allocation8], 4
          %s378 = int_to_ptr.vmem [resolvable:$true] %s377
          %383 = dma.hbm_to_vmem [thread:$0]  %s9, 512, %s378, [#allocation9], 64, 64, 4
        $region40: #{tpu_custom_call.1} parent=11 // pred_fallthru
          _
        // Predicated region
        $region41: #{tpu_custom_call.1} parent=11 // pred_check
          %p384 = pneg %p284
        $region42: #{tpu_custom_call.1} parent=11 // pred_check_branch
          %386 = sbr.rel (%p384) target = $region44
        $region43: #{tpu_custom_call.1} parent=11 // pred_region
          _
        $region44: #{tpu_custom_call.1} parent=11 // pred_fallthru
          _
      $region12: #{tpu_custom_call.1} parent=5 // pred_fallthru
        _
      %p387 = scmp.lt.s32.totalorder %s22, 4
      // Predicated region
      $region45: #{tpu_custom_call.1} parent=5 // pred_check
        %p388 = pneg %p387
      $region46: #{tpu_custom_call.1} parent=5 // pred_check_branch
        %390 = sbr.rel (%p388) target = $region48
      $region47: #{tpu_custom_call.1} parent=5 // pred_region
        // Predicated region
        $region49: #{tpu_custom_call.1} parent=47 // pred_check
          %p391 = pneg %p54
        $region50: #{tpu_custom_call.1} parent=47 // pred_check_branch
          %393 = sbr.rel (%p391) target = $region52
        $region51: #{tpu_custom_call.1} parent=47 // pred_region
          %p394 = scmp.lt.s32.totalorder %s29, 1
          %s395 = scalar_select %p394, %s29, 1
          %s396 = smul.addr %s395, 8
          %s397 = smul.addr %s396, 4
          %s398 = scalar_lea.vmem %s0, %s397
        $region52: #{tpu_custom_call.1} parent=47 // pred_fallthru
          _
        // Predicated region
        $region53: #{tpu_custom_call.1} parent=47 // pred_check
          %p399 = pneg %p82
        $region54: #{tpu_custom_call.1} parent=47 // pred_check_branch
          %401 = sbr.rel (%p399) target = $region56
        $region55: #{tpu_custom_call.1} parent=47 // pred_region
          %s402 = sand.u32 %s72, 1
          %s403 = sand.u32 %s72, 1
          %s404 = smul.addr %s403, 32
          %s405 = scalar_lea.vmem [#allocation6], %s404
          %s406 = smul.addr %s29, 16
          %s407 = sadd.s32 %s30, %s406
          %s408 = smul.addr %s407, 4
          %s409 = scalar_lea.vmem %s1, %s408
          // Predicated region
          $region57: #{tpu_custom_call.1} parent=55 // pred_check
            _
          $region58: #{tpu_custom_call.1} parent=55 // pred_check_branch
            %411 = sbr.rel (0) target = $region60
          $region59: #{tpu_custom_call.1} parent=55 // pred_region
            // Predicated region
            $region61: #{tpu_custom_call.1} parent=59 // pred_check
              _
            $region62: #{tpu_custom_call.1} parent=59 // pred_check_branch
              %413 = sbr.rel target = $region64
            $region63: #{tpu_custom_call.1} parent=59 // pred_region
              // Predicated region
              $region76: #{tpu_custom_call.1} parent=63 // pred_check
                _
              $region77: #{tpu_custom_call.1} parent=63 // pred_check_branch
                %442 = sbr.rel (0) target = $region79
              $region78: #{tpu_custom_call.1} parent=63 // pred_region
                loop: start=0, step=1, limit=1
                $region80: #{tpu_custom_call.1} parent=78 // loop_pre_header
                  _
                $region81: #{tpu_custom_call.1} parent=78 // loop_header
                  %s444 = sphi 0, %s448
                  %p445 = scmp.ge.s32.totalorder %s444, 1
                  %s449 = sphi %s409, %s409
                  %s450 = sphi %s405, %s405
                $region82: #{tpu_custom_call.1} parent=78 // loop_header_branch
                  %447 = sbr.rel (%p445) target = $region86
                $region83: #{tpu_custom_call.1} parent=78 // loop_body
                  _
                $region84: #{tpu_custom_call.1} parent=78 // loop_footer
                  %s448 = sadd.s32 1, %s444
                $region85: #{tpu_custom_call.1} parent=78 // loop_footer_branch
                  %443 = sbr.rel target = $region81
                $region86: #{tpu_custom_call.1} parent=78 // loop_exit
                  _
                loop: start=0, step=1, limit=1
                $region87: #{tpu_custom_call.1} parent=78 // loop_pre_header
                  _
                $region88: #{tpu_custom_call.1} parent=78 // loop_header
                  %s453 = sphi 0, %s457
                  %p454 = scmp.ge.s32.totalorder %s453, 1
                  %s458 = sphi %s409, %s409
                  %s459 = sphi %s405, %s405
                $region89: #{tpu_custom_call.1} parent=78 // loop_header_branch
                  %456 = sbr.rel (%p454) target = $region93
                $region90: #{tpu_custom_call.1} parent=78 // loop_body
                  %v460 = vld [vmem:[%s458] sm:$0xf]
                  %461 = vst [vmem:[%s459] sm:$0xf] %v460
                  %v462 = vld [vmem:[%s458 + $0x8] sm:$0xf]
                  %463 = vst [vmem:[%s459 + $0x4] sm:$0xf] %v462
                  %v464 = vld [vmem:[%s458 + $0x10] sm:$0xf]
                  %465 = vst [vmem:[%s459 + $0x8] sm:$0xf] %v464
                  %v466 = vld [vmem:[%s458 + $0x18] sm:$0xf]
                  %467 = vst [vmem:[%s459 + $0xc] sm:$0xf] %v466
                  %v468 = vld [vmem:[%s458 + $0x20] sm:$0xf]
                  %469 = vst [vmem:[%s459 + $0x10] sm:$0xf] %v468
                  %v470 = vld [vmem:[%s458 + $0x28] sm:$0xf]
                  %471 = vst [vmem:[%s459 + $0x14] sm:$0xf] %v470
                  %v472 = vld [vmem:[%s458 + $0x30] sm:$0xf]
                  %473 = vst [vmem:[%s459 + $0x18] sm:$0xf] %v472
                  %v474 = vld [vmem:[%s458 + $0x38] sm:$0xf]
                  %475 = vst [vmem:[%s459 + $0x1c] sm:$0xf] %v474
                $region91: #{tpu_custom_call.1} parent=78 // loop_footer
                  %s457 = sadd.s32 1, %s453
                $region92: #{tpu_custom_call.1} parent=78 // loop_footer_branch
                  %452 = sbr.rel target = $region88
                $region93: #{tpu_custom_call.1} parent=78 // loop_exit
                  _
              $region79: #{tpu_custom_call.1} parent=63 // pred_fallthru
                _
            $region64: #{tpu_custom_call.1} parent=59 // pred_fallthru
              _
            // Predicated region
            $region65: #{tpu_custom_call.1} parent=59 // pred_check
              _
            $region66: #{tpu_custom_call.1} parent=59 // pred_check_branch
              %415 = sbr.rel (0) target = $region68
            $region67: #{tpu_custom_call.1} parent=59 // pred_region
              loop: start=0, step=1, limit=1
              $region69: #{tpu_custom_call.1} parent=67 // loop_pre_header
                _
              $region70: #{tpu_custom_call.1} parent=67 // loop_header
                %s418 = sphi 0, %s422
                %p419 = scmp.ge.s32.totalorder %s418, 1
                %s423 = sphi %s409, %s409
                %s424 = sphi %s405, %s405
              $region71: #{tpu_custom_call.1} parent=67 // loop_header_branch
                %421 = sbr.rel (%p419) target = $region75
              $region72: #{tpu_custom_call.1} parent=67 // loop_body
                %v425 = vld [vmem:[%s423] sm:$0xf]
                %426 = vst [vmem:[%s424] sm:$0xf] %v425
                %v427 = vld [vmem:[%s423 + $0x8] sm:$0xf]
                %428 = vst [vmem:[%s424 + $0x4] sm:$0xf] %v427
                %v429 = vld [vmem:[%s423 + $0x10] sm:$0xf]
                %430 = vst [vmem:[%s424 + $0x8] sm:$0xf] %v429
                %v431 = vld [vmem:[%s423 + $0x18] sm:$0xf]
                %432 = vst [vmem:[%s424 + $0xc] sm:$0xf] %v431
                %v433 = vld [vmem:[%s423 + $0x20] sm:$0xf]
                %434 = vst [vmem:[%s424 + $0x10] sm:$0xf] %v433
                %v435 = vld [vmem:[%s423 + $0x28] sm:$0xf]
                %436 = vst [vmem:[%s424 + $0x14] sm:$0xf] %v435
                %v437 = vld [vmem:[%s423 + $0x30] sm:$0xf]
                %438 = vst [vmem:[%s424 + $0x18] sm:$0xf] %v437
                %v439 = vld [vmem:[%s423 + $0x38] sm:$0xf]
                %440 = vst [vmem:[%s424 + $0x1c] sm:$0xf] %v439
              $region73: #{tpu_custom_call.1} parent=67 // loop_footer
                %s422 = sadd.s32 1, %s418
              $region74: #{tpu_custom_call.1} parent=67 // loop_footer_branch
                %417 = sbr.rel target = $region70
              $region75: #{tpu_custom_call.1} parent=67 // loop_exit
                _
            $region68: #{tpu_custom_call.1} parent=59 // pred_fallthru
              _
          $region60: #{tpu_custom_call.1} parent=55 // pred_fallthru
            _
          %476 = vnop
        $region56: #{tpu_custom_call.1} parent=47 // pred_fallthru
          _
        // Predicated region
        $region94: #{tpu_custom_call.1} parent=47 // pred_check
          %p477 = pneg %p110
        $region95: #{tpu_custom_call.1} parent=47 // pred_check_branch
          %479 = sbr.rel (%p477) target = $region97
        $region96: #{tpu_custom_call.1} parent=47 // pred_region
          %s480 = sand.u32 %s100, 1
          %s481 = sand.u32 %s100, 1
          %s482 = smul.addr %s481, 32
          %s483 = scalar_lea.vmem [#allocation7], %s482
          %s484 = smul.addr %s29, 16
          %s485 = sadd.s32 %s30, %s484
          %s486 = smul.addr %s485, 4
          %s487 = scalar_lea.vmem %s2, %s486
          // Predicated region
          $region98: #{tpu_custom_call.1} parent=96 // pred_check
            _
          $region99: #{tpu_custom_call.1} parent=96 // pred_check_branch
            %489 = sbr.rel (0) target = $region101
          $region100: #{tpu_custom_call.1} parent=96 // pred_region
            // Predicated region
            $region102: #{tpu_custom_call.1} parent=100 // pred_check
              _
            $region103: #{tpu_custom_call.1} parent=100 // pred_check_branch
              %491 = sbr.rel target = $region105
            $region104: #{tpu_custom_call.1} parent=100 // pred_region
              // Predicated region
              $region117: #{tpu_custom_call.1} parent=104 // pred_check
                _
              $region118: #{tpu_custom_call.1} parent=104 // pred_check_branch
                %520 = sbr.rel (0) target = $region120
              $region119: #{tpu_custom_call.1} parent=104 // pred_region
                loop: start=0, step=1, limit=1
                $region121: #{tpu_custom_call.1} parent=119 // loop_pre_header
                  _
                $region122: #{tpu_custom_call.1} parent=119 // loop_header
                  %s522 = sphi 0, %s526
                  %p523 = scmp.ge.s32.totalorder %s522, 1
                  %s527 = sphi %s487, %s487
                  %s528 = sphi %s483, %s483
                $region123: #{tpu_custom_call.1} parent=119 // loop_header_branch
                  %525 = sbr.rel (%p523) target = $region127
                $region124: #{tpu_custom_call.1} parent=119 // loop_body
                  _
                $region125: #{tpu_custom_call.1} parent=119 // loop_footer
                  %s526 = sadd.s32 1, %s522
                $region126: #{tpu_custom_call.1} parent=119 // loop_footer_branch
                  %521 = sbr.rel target = $region122
                $region127: #{tpu_custom_call.1} parent=119 // loop_exit
                  _
                loop: start=0, step=1, limit=1
                $region128: #{tpu_custom_call.1} parent=119 // loop_pre_header
                  _
                $region129: #{tpu_custom_call.1} parent=119 // loop_header
                  %s531 = sphi 0, %s535
                  %p532 = scmp.ge.s32.totalorder %s531, 1
                  %s536 = sphi %s487, %s487
                  %s537 = sphi %s483, %s483
                $region130: #{tpu_custom_call.1} parent=119 // loop_header_branch
                  %534 = sbr.rel (%p532) target = $region134
                $region131: #{tpu_custom_call.1} parent=119 // loop_body
                  %v538 = vld [vmem:[%s536] sm:$0xf]
                  %539 = vst [vmem:[%s537] sm:$0xf] %v538
                  %v540 = vld [vmem:[%s536 + $0x8] sm:$0xf]
                  %541 = vst [vmem:[%s537 + $0x4] sm:$0xf] %v540
                  %v542 = vld [vmem:[%s536 + $0x10] sm:$0xf]
                  %543 = vst [vmem:[%s537 + $0x8] sm:$0xf] %v542
                  %v544 = vld [vmem:[%s536 + $0x18] sm:$0xf]
                  %545 = vst [vmem:[%s537 + $0xc] sm:$0xf] %v544
                  %v546 = vld [vmem:[%s536 + $0x20] sm:$0xf]
                  %547 = vst [vmem:[%s537 + $0x10] sm:$0xf] %v546
                  %v548 = vld [vmem:[%s536 + $0x28] sm:$0xf]
                  %549 = vst [vmem:[%s537 + $0x14] sm:$0xf] %v548
                  %v550 = vld [vmem:[%s536 + $0x30] sm:$0xf]
                  %551 = vst [vmem:[%s537 + $0x18] sm:$0xf] %v550
                  %v552 = vld [vmem:[%s536 + $0x38] sm:$0xf]
                  %553 = vst [vmem:[%s537 + $0x1c] sm:$0xf] %v552
                $region132: #{tpu_custom_call.1} parent=119 // loop_footer
                  %s535 = sadd.s32 1, %s531
                $region133: #{tpu_custom_call.1} parent=119 // loop_footer_branch
                  %530 = sbr.rel target = $region129
                $region134: #{tpu_custom_call.1} parent=119 // loop_exit
                  _
              $region120: #{tpu_custom_call.1} parent=104 // pred_fallthru
                _
            $region105: #{tpu_custom_call.1} parent=100 // pred_fallthru
              _
            // Predicated region
            $region106: #{tpu_custom_call.1} parent=100 // pred_check
              _
            $region107: #{tpu_custom_call.1} parent=100 // pred_check_branch
              %493 = sbr.rel (0) target = $region109
            $region108: #{tpu_custom_call.1} parent=100 // pred_region
              loop: start=0, step=1, limit=1
              $region110: #{tpu_custom_call.1} parent=108 // loop_pre_header
                _
              $region111: #{tpu_custom_call.1} parent=108 // loop_header
                %s496 = sphi 0, %s500
                %p497 = scmp.ge.s32.totalorder %s496, 1
                %s501 = sphi %s487, %s487
                %s502 = sphi %s483, %s483
              $region112: #{tpu_custom_call.1} parent=108 // loop_header_branch
                %499 = sbr.rel (%p497) target = $region116
              $region113: #{tpu_custom_call.1} parent=108 // loop_body
                %v503 = vld [vmem:[%s501] sm:$0xf]
                %504 = vst [vmem:[%s502] sm:$0xf] %v503
                %v505 = vld [vmem:[%s501 + $0x8] sm:$0xf]
                %506 = vst [vmem:[%s502 + $0x4] sm:$0xf] %v505
                %v507 = vld [vmem:[%s501 + $0x10] sm:$0xf]
                %508 = vst [vmem:[%s502 + $0x8] sm:$0xf] %v507
                %v509 = vld [vmem:[%s501 + $0x18] sm:$0xf]
                %510 = vst [vmem:[%s502 + $0xc] sm:$0xf] %v509
                %v511 = vld [vmem:[%s501 + $0x20] sm:$0xf]
                %512 = vst [vmem:[%s502 + $0x10] sm:$0xf] %v511
                %v513 = vld [vmem:[%s501 + $0x28] sm:$0xf]
                %514 = vst [vmem:[%s502 + $0x14] sm:$0xf] %v513
                %v515 = vld [vmem:[%s501 + $0x30] sm:$0xf]
                %516 = vst [vmem:[%s502 + $0x18] sm:$0xf] %v515
                %v517 = vld [vmem:[%s501 + $0x38] sm:$0xf]
                %518 = vst [vmem:[%s502 + $0x1c] sm:$0xf] %v517
              $region114: #{tpu_custom_call.1} parent=108 // loop_footer
                %s500 = sadd.s32 1, %s496
              $region115: #{tpu_custom_call.1} parent=108 // loop_footer_branch
                %495 = sbr.rel target = $region111
              $region116: #{tpu_custom_call.1} parent=108 // loop_exit
                _
            $region109: #{tpu_custom_call.1} parent=100 // pred_fallthru
              _
          $region101: #{tpu_custom_call.1} parent=96 // pred_fallthru
            _
          %554 = vnop
        $region97: #{tpu_custom_call.1} parent=47 // pred_fallthru
          _
        // Predicated region
        $region135: #{tpu_custom_call.1} parent=47 // pred_check
          %p555 = pneg %p306
        $region136: #{tpu_custom_call.1} parent=47 // pred_check_branch
          %557 = sbr.rel (%p555) target = $region138
        $region137: #{tpu_custom_call.1} parent=47 // pred_region
          %s558 = sand.u32 %s296, 1
          %s559 = scalar_lea.sflag [#allocation11], %s558
          %s560 = sand.u32 %s296, 1
          %s561 = smul.addr %s560, 8
          %s562 = scalar_lea.vmem [#allocation10], %s561
          %s564 = ssub.s32 128, 128
          %565 = vsyncadd %s559, %s564
          %s566 = smul.addr %s29, 2
          %s567 = sadd.s32 %s30, %s566
          %s568 = smul.addr %s567, 128
          %s569 = scalar_lea.hbm %s11, %s568
          %s571 = sshll.u32 %s562, 4
          %s572 = int_to_ptr.vmem [resolvable:$true] %s571
          %574 = dma.hbm_to_vmem [thread:$0]  %s569, 128, %s572, %s559
        $region138: #{tpu_custom_call.1} parent=47 // pred_fallthru
          _
      $region48: #{tpu_custom_call.1} parent=5 // pred_fallthru
        _
      %p575 = scmp.le.s32.totalorder 1, %s22
      %p576 = scmp.lt.s32.totalorder %s22, 5
      %p577 = pnand %p575, %p576
      %p578 = pneg %p577
      // Predicated region
      $region139: #{tpu_custom_call.1} parent=5 // pred_check
        _
      $region140: #{tpu_custom_call.1} parent=5 // pred_check_branch
        %580 = sbr.rel (%p577) target = $region142
      $region141: #{tpu_custom_call.1} parent=5 // pred_region
        %s581 = ssub.s32 %s22, 1
        %s582 = sand.u32 %s75, 1
        %s583 = sand.u32 %s75, 1
        %s584 = smul.addr %s583, 32
        %s585 = scalar_lea.vmem [#allocation6], %s584
        // Predicated region
        $region143: #{tpu_custom_call.1} parent=141 // pred_check
          %p586 = pneg %p88
        $region144: #{tpu_custom_call.1} parent=141 // pred_check_branch
          %588 = sbr.rel (%p586) target = $region146
        $region145: #{tpu_custom_call.1} parent=141 // pred_region
          _
        $region146: #{tpu_custom_call.1} parent=141 // pred_fallthru
          _
        %s589 = sand.u32 %s103, 1
        %s590 = sand.u32 %s103, 1
        %s591 = smul.addr %s590, 32
        %s592 = scalar_lea.vmem [#allocation7], %s591
        // Predicated region
        $region147: #{tpu_custom_call.1} parent=141 // pred_check
          %p593 = pneg %p116
        $region148: #{tpu_custom_call.1} parent=141 // pred_check_branch
          %595 = sbr.rel (%p593) target = $region150
        $region149: #{tpu_custom_call.1} parent=141 // pred_region
          _
        $region150: #{tpu_custom_call.1} parent=141 // pred_fallthru
          _
        // Predicated region
        $region151: #{tpu_custom_call.1} parent=141 // pred_check
          %p596 = pneg %p263
        $region152: #{tpu_custom_call.1} parent=141 // pred_check_branch
          %598 = sbr.rel (%p596) target = $region154
        $region153: #{tpu_custom_call.1} parent=141 // pred_region
          %599 = dma.done [#allocation9], 512
        $region154: #{tpu_custom_call.1} parent=141 // pred_fallthru
          _
        %s600 = sand.u32 %s299, 1
        %s601 = scalar_lea.sflag [#allocation11], %s600
        %s602 = sand.u32 %s299, 1
        %s603 = smul.addr %s602, 8
        %s604 = scalar_lea.vmem [#allocation10], %s603
        // Predicated region
        $region155: #{tpu_custom_call.1} parent=141 // pred_check
          %p605 = pneg %p312
        $region156: #{tpu_custom_call.1} parent=141 // pred_check_branch
          %607 = sbr.rel (%p605) target = $region158
        $region157: #{tpu_custom_call.1} parent=141 // pred_region
          %608 = dma.done %s601, 128
        $region158: #{tpu_custom_call.1} parent=141 // pred_fallthru
          _
        %p609 = scmp.lt.s32.totalorder %s31, 1
        %s610 = scalar_select %p609, %s31, 1
        %s611 = smul.addr %s610, 8
        %s612 = smul.addr %s611, 4
        %s613 = scalar_lea.vmem %s0, %s612
        %p614 = pneg %p60
        %p615 = pneg %p57
        %s616 = sand.u32 %s75, 1
        %s617 = sand.u32 %s75, 1
        %s618 = smul.addr %s617, 32
        %s619 = scalar_lea.vmem [#allocation6], %s618
        %p620 = pneg %p88
        %p621 = pneg %p85
        %s622 = sand.u32 %s103, 1
        %s623 = sand.u32 %s103, 1
        %s624 = smul.addr %s623, 32
        %s625 = scalar_lea.vmem [#allocation7], %s624
        %p626 = pneg %p116
        %p627 = pneg %p113
        %p628 = pneg %p137
        %p629 = pneg %p134
        %p630 = pneg %p158
        %p631 = pneg %p155
        %p632 = pneg %p179
        %p633 = pneg %p176
        %p634 = pneg %p200
        %p635 = pneg %p197
        %p636 = pneg %p221
        %p637 = pneg %p218
        %p638 = pneg %p242
        %p639 = pneg %p239
        %p640 = pneg %p263
        %p641 = pneg %p260
        %p642 = pneg %p284
        %p643 = pneg %p281
        %s644 = sand.u32 %s299, 1
        %s645 = scalar_lea.sflag [#allocation11], %s644
        %s646 = sand.u32 %s299, 1
        %s647 = smul.addr %s646, 8
        %s648 = scalar_lea.vmem [#allocation10], %s647
        %p649 = pneg %p312
        %p650 = pneg %p309
        %p651 = pneg %p338
        %p652 = pneg %p335
        %p653 = scmp.lt.s32.totalorder %s31, 1
        %s654 = scalar_select %p653, %s31, 1
        %s655 = smul.addr %s654, 8
        %s656 = smul.addr %s655, 4
        %s657 = scalar_lea.vmem %s12, %s656
        %p658 = scmp.lt.s32.totalorder %s31, 1
        %s659 = scalar_select %p658, %s31, 1
        %s660 = smul.addr %s659, 8
        %s661 = smul.addr %s660, 4
        %s662 = scalar_lea.vmem %s0, %s661
        %p663 = scmp.lt.s32.totalorder %s31, 1
        %s664 = scalar_select %p663, %s31, 1
        %s665 = smul.addr %s664, 8
        %s666 = smul.addr %s665, 4
        %s667 = scalar_lea.vmem %s12, %s666
        %p669 = scmp.eq.s32.totalorder %s32, 0
        // Predicated region
        $region159: #{tpu_custom_call.1} parent=141 // pred_check
          %p670 = pneg %p669
        $region160: #{tpu_custom_call.1} parent=141 // pred_check_branch
          %672 = sbr.rel (%p670) target = $region162
        $region161: #{tpu_custom_call.1} parent=141 // pred_region
          %v673 = vld [vmem:[%s3] sm:$0xf]
          %v674 = vld [vmem:[%s3 + $0x4] sm:$0xf]
          %v675 = vld [vmem:[%s3 + $0x8] sm:$0xf]
          %v676 = vld [vmem:[%s3 + $0xc] sm:$0xf]
          %v677 = vld [vmem:[%s3 + $0x10] sm:$0xf]
          %v678 = vld [vmem:[%s3 + $0x14] sm:$0xf]
          %v679 = vld [vmem:[%s3 + $0x18] sm:$0xf]
          %v680 = vld [vmem:[%s3 + $0x1c] sm:$0xf]
          %v681 = vld [vmem:[%s662] sm:$0xf]
          %v682 = vld [vmem:[%s662 + $0x4] sm:$0xf]
          %v683 = vld [vmem:[%s662 + $0x8] sm:$0xf]
          %v684 = vld [vmem:[%s662 + $0xc] sm:$0xf]
          %v685 = vld [vmem:[%s662 + $0x10] sm:$0xf]
          %v686 = vld [vmem:[%s662 + $0x14] sm:$0xf]
          %v687 = vld [vmem:[%s662 + $0x18] sm:$0xf]
          %v688 = vld [vmem:[%s662 + $0x1c] sm:$0xf]
          %v689 = vld [vmem:[%s4] sm:$0xff]
          %v690 = vld [vmem:[%s4 + $0x8] sm:$0xff]
          %v691 = vld [vmem:[%s4 + $0x10] sm:$0xff]
          %v692 = vld [vmem:[%s4 + $0x18] sm:$0xff]
          %v693 = vld [vmem:[%s4 + $0x20] sm:$0xff]
          %v694 = vld [vmem:[%s4 + $0x28] sm:$0xff]
          %v695 = vld [vmem:[%s4 + $0x30] sm:$0xff]
          %v696 = vld [vmem:[%s4 + $0x38] sm:$0xff]
          %698 = vset.pattern.permute.xlu0 0
          %699 = vperm.xlu0 %698, %v689
          %v700 = vpop.permute.xlu0 %699
          %703 = vset.pattern.permute.xlu0 0
          %704 = vperm.xlu0 %703, %v690
          %v705 = vpop.permute.xlu0 %704
          %708 = vset.pattern.permute.xlu0 0
          %709 = vperm.xlu0 %708, %v691
          %v710 = vpop.permute.xlu0 %709
          %713 = vset.pattern.permute.xlu0 0
          %714 = vperm.xlu0 %713, %v692
          %v715 = vpop.permute.xlu0 %714
          %718 = vset.pattern.permute.xlu0 0
          %719 = vperm.xlu0 %718, %v693
          %v720 = vpop.permute.xlu0 %719
          %723 = vset.pattern.permute.xlu0 0
          %724 = vperm.xlu0 %723, %v694
          %v725 = vpop.permute.xlu0 %724
          %728 = vset.pattern.permute.xlu0 0
          %729 = vperm.xlu0 %728, %v695
          %v730 = vpop.permute.xlu0 %729
          %733 = vset.pattern.permute.xlu0 0
          %734 = vperm.xlu0 %733, %v696
          %v735 = vpop.permute.xlu0 %734
          %v745 = vunpack.c.l.b16 %v673
          %v746 = vunpack.c.l.b16 %v674
          %v747 = vunpack.c.l.b16 %v675
          %v748 = vunpack.c.l.b16 %v676
          %v749 = vunpack.c.l.b16 %v677
          %v750 = vunpack.c.l.b16 %v678
          %v751 = vunpack.c.l.b16 %v679
          %v752 = vunpack.c.l.b16 %v680
          %v753 = vpack.c.b16 %v746, %v745
          %v754 = vpack.c.b16 %v748, %v747
          %v755 = vpack.c.b16 %v750, %v749
          %v756 = vpack.c.b16 %v752, %v751
          %v765 = vunpack.c.l.b16 %v681
          %v766 = vunpack.c.l.b16 %v682
          %v767 = vunpack.c.l.b16 %v683
          %v768 = vunpack.c.l.b16 %v684
          %v769 = vunpack.c.l.b16 %v685
          %v770 = vunpack.c.l.b16 %v686
          %v771 = vunpack.c.l.b16 %v687
          %v772 = vunpack.c.l.b16 %v688
          %v773 = vpack.c.b16 %v766, %v765
          %v774 = vpack.c.b16 %v768, %v767
          %v775 = vpack.c.b16 %v770, %v769
          %v776 = vpack.c.b16 %v772, %v771
          %vm781 = vcmask 523264
          %v783 = vsel %vm781, %v753, 0
          %v786 = vsel %vm781, %v754, 0
          %v789 = vsel %vm781, %v755, 0
          %v792 = vsel %vm781, %v756, 0
          %794 = vmatprep.subr.bf16.mxu0 0
          %795 = vmatpush1.bf16.msra.mxu0 %v773
          %796 = vmatprep.subr.bf16.mxu0 0
          %797 = vmatpush1.bf16.msra.mxu0 %v774
          %798 = vmatprep.subr.bf16.mxu0 0
          %799 = vmatpush1.bf16.msra.mxu0 %v775
          %800 = vmatprep.subr.bf16.mxu0 0
          %801 = vmatpush1.bf16.msra.mxu0 %v776
          %802 = vmatprep.subr.bf16.mxu0 0
          %803 = vmatpush1.bf16.msra.mxu0 0
          %804 = vmatprep.subr.bf16.mxu0 0
          %805 = vmatpush1.bf16.msra.mxu0 0
          %806 = vmatprep.subr.bf16.mxu0 0
          %807 = vmatpush1.bf16.msra.mxu0 0
          %808 = vmatprep.subr.bf16.mxu0 0
          %809 = vmatpush1.bf16.msra.mxu0 0
          %810 = vmatprep.subr.bf16.mxu0 0
          %811 = vmatpush1.bf16.msra.mxu0 0
          %812 = vmatprep.subr.bf16.mxu0 0
          %813 = vmatpush1.bf16.msra.mxu0 0
          %814 = vmatprep.subr.bf16.mxu0 0
          %815 = vmatpush1.bf16.msra.mxu0 0
          %816 = vmatprep.subr.bf16.mxu0 0
          %817 = vmatpush1.bf16.msra.mxu0 0
          %818 = vmatprep.subr.bf16.mxu0 0
          %819 = vmatpush1.bf16.msra.mxu0 0
          %820 = vmatprep.subr.bf16.mxu0 0
          %821 = vmatpush1.bf16.msra.mxu0 0
          %822 = vmatprep.subr.bf16.mxu0 0
          %823 = vmatpush1.bf16.msra.mxu0 0
          %824 = vmatprep.subr.bf16.mxu0 0
          %825 = vmatpush1.bf16.msra.mxu0 0
          %826 = vmatprep.mubr.bf16.mxu0 0
          %827 = vmatmul.mubr.bf16.gmra.mrb[0].mxu0 %v783
          %v828 = vpop.f32.mrb[0].mxu0
          %v829 = vadd.f32 %v700, %v828
          %v830 = vpop.f32.mrb[0].mxu0
          %v831 = vpop.f32.mrb[0].mxu0
          %v832 = vadd.f32 %v705, %v831
          %v833 = vpop.f32.mrb[0].mxu0
          %834 = vmatprep.mubr.bf16.mxu0 0
          %835 = vmatmul.mubr.bf16.gmra.mrb[0].mxu0 %v786
          %v836 = vpop.f32.mrb[0].mxu0
          %v837 = vadd.f32 %v710, %v836
          %v838 = vpop.f32.mrb[0].mxu0
          %v839 = vpop.f32.mrb[0].mxu0
          %v840 = vadd.f32 %v715, %v839
          %v841 = vpop.f32.mrb[0].mxu0
          %842 = vmatprep.mubr.bf16.mxu0 0
          %843 = vmatmul.mubr.bf16.gmra.mrb[0].mxu0 %v789
          %v844 = vpop.f32.mrb[0].mxu0
          %v845 = vadd.f32 %v720, %v844
          %v846 = vpop.f32.mrb[0].mxu0
          %v847 = vpop.f32.mrb[0].mxu0
          %v848 = vadd.f32 %v725, %v847
          %v849 = vpop.f32.mrb[0].mxu0
          %850 = vmatprep.mubr.bf16.mxu0 0
          %851 = vmatmul.mubr.bf16.gmra.mrb[0].mxu0 %v792
          %v852 = vpop.f32.mrb[0].mxu0
          %v853 = vadd.f32 %v730, %v852
          %v854 = vpop.f32.mrb[0].mxu0
          %v855 = vpop.f32.mrb[0].mxu0
          %v856 = vadd.f32 %v735, %v855
          %v857 = vpop.f32.mrb[0].mxu0
          %858 = vdwg.mxu0
          %v859 = vpack.c.bf16 %v832, %v829
          %v860 = vpack.c.bf16 %v840, %v837
          %v861 = vpack.c.bf16 %v848, %v845
          %v862 = vpack.c.bf16 %v856, %v853
          %vm863 = vcmask 64512
          %864 = vst.msk [vmem:[#allocation2] sm:$0xff] %vm863, %v859
          %865 = vst.msk [vmem:[#allocation2 + $0x8] sm:$0xff] %vm863, %v860
          %866 = vst.msk [vmem:[#allocation2 + $0x10] sm:$0xff] %vm863, %v861
          %867 = vst.msk [vmem:[#allocation2 + $0x18] sm:$0xff] %vm863, %v862
          %vm868 = vcmask 7168
          %869 = vst.msk [vmem:[#allocation3] sm:$0xff] %vm868, -inf
          %870 = vst.msk [vmem:[#allocation3 + $0x8] sm:$0xff] %vm868, -inf
          %871 = vst.msk [vmem:[#allocation3 + $0x10] sm:$0xff] %vm868, -inf
          %872 = vst.msk [vmem:[#allocation3 + $0x18] sm:$0xff] %vm868, -inf
          %873 = vst.msk [vmem:[#allocation4] sm:$0xff] %vm868, 0.0
          %874 = vst.msk [vmem:[#allocation4 + $0x8] sm:$0xff] %vm868, 0.0
          %875 = vst.msk [vmem:[#allocation4 + $0x10] sm:$0xff] %vm868, 0.0
          %876 = vst.msk [vmem:[#allocation4 + $0x18] sm:$0xff] %vm868, 0.0
          %vm877 = vcmask 130048
          %878 = vst.msk [vmem:[#allocation5] sm:$0xff] %vm877, 0.0
          %879 = vst.msk [vmem:[#allocation5 + $0x8] sm:$0xff] %vm877, 0.0
          %880 = vst.msk [vmem:[#allocation5 + $0x10] sm:$0xff] %vm877, 0.0
          %881 = vst.msk [vmem:[#allocation5 + $0x18] sm:$0xff] %vm877, 0.0
        $region162: #{tpu_custom_call.1} parent=141 // pred_fallthru
          _
        %v882 = vld [vmem:[%s5] sm:$0xf]
        %v883 = vld [vmem:[%s5 + $0x4] sm:$0xf]
        %v884 = vld [vmem:[%s5 + $0x8] sm:$0xf]
        %v885 = vld [vmem:[%s5 + $0xc] sm:$0xf]
        %v886 = vld [vmem:[%s5 + $0x10] sm:$0xf]
        %v887 = vld [vmem:[%s5 + $0x14] sm:$0xf]
        %v888 = vld [vmem:[%s5 + $0x18] sm:$0xf]
        %v889 = vld [vmem:[%s5 + $0x1c] sm:$0xf]
        %v890 = vld [vmem:[%s585] sm:$0xf]
        %v891 = vld [vmem:[%s585 + $0x4] sm:$0xf]
        %v892 = vld [vmem:[%s585 + $0x8] sm:$0xf]
        %v893 = vld [vmem:[%s585 + $0xc] sm:$0xf]
        %v894 = vld [vmem:[%s585 + $0x10] sm:$0xf]
        %v895 = vld [vmem:[%s585 + $0x14] sm:$0xf]
        %v896 = vld [vmem:[%s585 + $0x18] sm:$0xf]
        %v897 = vld [vmem:[%s585 + $0x1c] sm:$0xf]
        %v898 = vld [vmem:[%s6] sm:$0xff]
        %v899 = vld [vmem:[%s6 + $0x8] sm:$0xff]
        %v900 = vld [vmem:[%s6 + $0x10] sm:$0xff]
        %v901 = vld [vmem:[%s6 + $0x18] sm:$0xff]
        %v902 = vld [vmem:[%s6 + $0x20] sm:$0xff]
        %v903 = vld [vmem:[%s6 + $0x28] sm:$0xff]
        %v904 = vld [vmem:[%s6 + $0x30] sm:$0xff]
        %v905 = vld [vmem:[%s6 + $0x38] sm:$0xff]
        %907 = vset.pattern.permute.xlu0 0
        %908 = vperm.xlu0 %907, %v898
        %v909 = vpop.permute.xlu0 %908
        %912 = vset.pattern.permute.xlu0 0
        %913 = vperm.xlu0 %912, %v899
        %v914 = vpop.permute.xlu0 %913
        %917 = vset.pattern.permute.xlu0 0
        %918 = vperm.xlu0 %917, %v900
        %v919 = vpop.permute.xlu0 %918
        %922 = vset.pattern.permute.xlu0 0
        %923 = vperm.xlu0 %922, %v901
        %v924 = vpop.permute.xlu0 %923
        %927 = vset.pattern.permute.xlu0 0
        %928 = vperm.xlu0 %927, %v902
        %v929 = vpop.permute.xlu0 %928
        %932 = vset.pattern.permute.xlu0 0
        %933 = vperm.xlu0 %932, %v903
        %v934 = vpop.permute.xlu0 %933
        %937 = vset.pattern.permute.xlu0 0
        %938 = vperm.xlu0 %937, %v904
        %v939 = vpop.permute.xlu0 %938
        %942 = vset.pattern.permute.xlu0 0
        %943 = vperm.xlu0 %942, %v905
        %v944 = vpop.permute.xlu0 %943
        %v954 = vunpack.c.l.b16 %v882
        %v955 = vunpack.c.l.b16 %v883
        %v956 = vunpack.c.l.b16 %v884
        %v957 = vunpack.c.l.b16 %v885
        %v958 = vunpack.c.l.b16 %v886
        %v959 = vunpack.c.l.b16 %v887
        %v960 = vunpack.c.l.b16 %v888
        %v961 = vunpack.c.l.b16 %v889
        %v962 = vpack.c.b16 %v955, %v954
        %v963 = vpack.c.b16 %v957, %v956
        %v964 = vpack.c.b16 %v959, %v958
        %v965 = vpack.c.b16 %v961, %v960
        %v974 = vunpack.c.l.b16 %v890
        %v975 = vunpack.c.l.b16 %v891
        %v976 = vunpack.c.l.b16 %v892
        %v977 = vunpack.c.l.b16 %v893
        %v978 = vunpack.c.l.b16 %v894
        %v979 = vunpack.c.l.b16 %v895
        %v980 = vunpack.c.l.b16 %v896
        %v981 = vunpack.c.l.b16 %v897
        %v982 = vpack.c.b16 %v975, %v974
        %v983 = vpack.c.b16 %v977, %v976
        %v984 = vpack.c.b16 %v979, %v978
        %v985 = vpack.c.b16 %v981, %v980
        %vm990 = vcmask 523264
        %v992 = vsel %vm990, %v962, 0
        %v995 = vsel %vm990, %v963, 0
        %v998 = vsel %vm990, %v964, 0
        %v1001 = vsel %vm990, %v965, 0
        %1003 = vmatprep.subr.bf16.mxu0 0
        %1004 = vmatpush1.bf16.msra.mxu0 %v982
        %1005 = vmatprep.subr.bf16.mxu0 0
        %1006 = vmatpush1.bf16.msra.mxu0 %v983
        %1007 = vmatprep.subr.bf16.mxu0 0
        %1008 = vmatpush1.bf16.msra.mxu0 %v984
        %1009 = vmatprep.subr.bf16.mxu0 0
        %1010 = vmatpush1.bf16.msra.mxu0 %v985
        %1011 = vmatprep.subr.bf16.mxu0 0
        %1012 = vmatpush1.bf16.msra.mxu0 0
        %1013 = vmatprep.subr.bf16.mxu0 0
        %1014 = vmatpush1.bf16.msra.mxu0 0
        %1015 = vmatprep.subr.bf16.mxu0 0
        %1016 = vmatpush1.bf16.msra.mxu0 0
        %1017 = vmatprep.subr.bf16.mxu0 0
        %1018 = vmatpush1.bf16.msra.mxu0 0
        %1019 = vmatprep.subr.bf16.mxu0 0
        %1020 = vmatpush1.bf16.msra.mxu0 0
        %1021 = vmatprep.subr.bf16.mxu0 0
        %1022 = vmatpush1.bf16.msra.mxu0 0
        %1023 = vmatprep.subr.bf16.mxu0 0
        %1024 = vmatpush1.bf16.msra.mxu0 0
        %1025 = vmatprep.subr.bf16.mxu0 0
        %1026 = vmatpush1.bf16.msra.mxu0 0
        %1027 = vmatprep.subr.bf16.mxu0 0
        %1028 = vmatpush1.bf16.msra.mxu0 0
        %1029 = vmatprep.subr.bf16.mxu0 0
        %1030 = vmatpush1.bf16.msra.mxu0 0
        %1031 = vmatprep.subr.bf16.mxu0 0
        %1032 = vmatpush1.bf16.msra.mxu0 0
        %1033 = vmatprep.subr.bf16.mxu0 0
        %1034 = vmatpush1.bf16.msra.mxu0 0
        %1035 = vmatprep.mubr.bf16.mxu0 0
        %1036 = vmatmul.mubr.bf16.gmra.mrb[0].mxu0 %v992
        %v1037 = vpop.f32.mrb[0].mxu0
        %v1038 = vadd.f32 %v909, %v1037
        %v1039 = vpop.f32.mrb[0].mxu0
        %v1040 = vpop.f32.mrb[0].mxu0
        %v1041 = vadd.f32 %v914, %v1040
        %v1042 = vpop.f32.mrb[0].mxu0
        %1043 = vmatprep.mubr.bf16.mxu0 0
        %1044 = vmatmul.mubr.bf16.gmra.mrb[0].mxu0 %v995
        %v1045 = vpop.f32.mrb[0].mxu0
        %v1046 = vadd.f32 %v919, %v1045
        %v1047 = vpop.f32.mrb[0].mxu0
        %v1048 = vpop.f32.mrb[0].mxu0
        %v1049 = vadd.f32 %v924, %v1048
        %v1050 = vpop.f32.mrb[0].mxu0
        %1051 = vmatprep.mubr.bf16.mxu0 0
        %1052 = vmatmul.mubr.bf16.gmra.mrb[0].mxu0 %v998
        %v1053 = vpop.f32.mrb[0].mxu0
        %v1054 = vadd.f32 %v929, %v1053
        %v1055 = vpop.f32.mrb[0].mxu0
        %v1056 = vpop.f32.mrb[0].mxu0
        %v1057 = vadd.f32 %v934, %v1056
        %v1058 = vpop.f32.mrb[0].mxu0
        %1059 = vmatprep.mubr.bf16.mxu0 0
        %1060 = vmatmul.mubr.bf16.gmra.mrb[0].mxu0 %v1001
        %v1061 = vpop.f32.mrb[0].mxu0
        %v1062 = vadd.f32 %v939, %v1061
        %v1063 = vpop.f32.mrb[0].mxu0
        %v1064 = vpop.f32.mrb[0].mxu0
        %v1065 = vadd.f32 %v944, %v1064
        %v1066 = vpop.f32.mrb[0].mxu0
        %1067 = vdwg.mxu0
        %v1068 = vld [vmem:[%s7] sm:$0xf]
        %v1069 = vld [vmem:[%s7 + $0x4] sm:$0xf]
        %v1070 = vld [vmem:[%s7 + $0x8] sm:$0xf]
        %v1071 = vld [vmem:[%s7 + $0xc] sm:$0xf]
        %v1072 = vld [vmem:[%s7 + $0x10] sm:$0xf]
        %v1073 = vld [vmem:[%s7 + $0x14] sm:$0xf]
        %v1074 = vld [vmem:[%s7 + $0x18] sm:$0xf]
        %v1075 = vld [vmem:[%s7 + $0x1c] sm:$0xf]
        %v1076 = vld [vmem:[%s592] sm:$0xf]
        %v1077 = vld [vmem:[%s592 + $0x4] sm:$0xf]
        %v1078 = vld [vmem:[%s592 + $0x8] sm:$0xf]
        %v1079 = vld [vmem:[%s592 + $0xc] sm:$0xf]
        %v1080 = vld [vmem:[%s592 + $0x10] sm:$0xf]
        %v1081 = vld [vmem:[%s592 + $0x14] sm:$0xf]
        %v1082 = vld [vmem:[%s592 + $0x18] sm:$0xf]
        %v1083 = vld [vmem:[%s592 + $0x1c] sm:$0xf]
        %v1084 = vld [vmem:[%s8] sm:$0xff]
        %v1085 = vld [vmem:[%s8 + $0x8] sm:$0xff]
        %v1086 = vld [vmem:[%s8 + $0x10] sm:$0xff]
        %v1087 = vld [vmem:[%s8 + $0x18] sm:$0xff]
        %v1088 = vld [vmem:[%s8 + $0x20] sm:$0xff]
        %v1089 = vld [vmem:[%s8 + $0x28] sm:$0xff]
        %v1090 = vld [vmem:[%s8 + $0x30] sm:$0xff]
        %v1091 = vld [vmem:[%s8 + $0x38] sm:$0xff]
        %1093 = vset.pattern.permute.xlu0 0
        %1094 = vperm.xlu0 %1093, %v1084
        %v1095 = vpop.permute.xlu0 %1094
        %1098 = vset.pattern.permute.xlu0 0
        %1099 = vperm.xlu0 %1098, %v1085
        %v1100 = vpop.permute.xlu0 %1099
        %1103 = vset.pattern.permute.xlu0 0
        %1104 = vperm.xlu0 %1103, %v1086
        %v1105 = vpop.permute.xlu0 %1104
        %1108 = vset.pattern.permute.xlu0 0
        %1109 = vperm.xlu0 %1108, %v1087
        %v1110 = vpop.permute.xlu0 %1109
        %1113 = vset.pattern.permute.xlu0 0
        %1114 = vperm.xlu0 %1113, %v1088
        %v1115 = vpop.permute.xlu0 %1114
        %1118 = vset.pattern.permute.xlu0 0
        %1119 = vperm.xlu0 %1118, %v1089
        %v1120 = vpop.permute.xlu0 %1119
        %1123 = vset.pattern.permute.xlu0 0
        %1124 = vperm.xlu0 %1123, %v1090
        %v1125 = vpop.permute.xlu0 %1124
        %1128 = vset.pattern.permute.xlu0 0
        %1129 = vperm.xlu0 %1128, %v1091
        %v1130 = vpop.permute.xlu0 %1129
        %v1140 = vunpack.c.l.b16 %v1068
        %v1141 = vunpack.c.l.b16 %v1069
        %v1142 = vunpack.c.l.b16 %v1070
        %v1143 = vunpack.c.l.b16 %v1071
        %v1144 = vunpack.c.l.b16 %v1072
        %v1145 = vunpack.c.l.b16 %v1073
        %v1146 = vunpack.c.l.b16 %v1074
        %v1147 = vunpack.c.l.b16 %v1075
        %v1148 = vpack.c.b16 %v1141, %v1140
        %v1149 = vpack.c.b16 %v1143, %v1142
        %v1150 = vpack.c.b16 %v1145, %v1144
        %v1151 = vpack.c.b16 %v1147, %v1146
        %v1160 = vunpack.c.l.b16 %v1076
        %v1161 = vunpack.c.l.b16 %v1077
        %v1162 = vunpack.c.l.b16 %v1078
        %v1163 = vunpack.c.l.b16 %v1079
        %v1164 = vunpack.c.l.b16 %v1080
        %v1165 = vunpack.c.l.b16 %v1081
        %v1166 = vunpack.c.l.b16 %v1082
        %v1167 = vunpack.c.l.b16 %v1083
        %v1168 = vpack.c.b16 %v1161, %v1160
        %v1169 = vpack.c.b16 %v1163, %v1162
        %v1170 = vpack.c.b16 %v1165, %v1164
        %v1171 = vpack.c.b16 %v1167, %v1166
        %v1177 = vsel %vm990, %v1148, 0
        %v1180 = vsel %vm990, %v1149, 0
        %v1183 = vsel %vm990, %v1150, 0
        %v1186 = vsel %vm990, %v1151, 0
        %1188 = vmatprep.subr.bf16.mxu0 0
        %1189 = vmatpush1.bf16.msra.mxu0 %v1168
        %1190 = vmatprep.subr.bf16.mxu0 0
        %1191 = vmatpush1.bf16.msra.mxu0 %v1169
        %1192 = vmatprep.subr.bf16.mxu0 0
        %1193 = vmatpush1.bf16.msra.mxu0 %v1170
        %1194 = vmatprep.subr.bf16.mxu0 0
        %1195 = vmatpush1.bf16.msra.mxu0 %v1171
        %1196 = vmatprep.subr.bf16.mxu0 0
        %1197 = vmatpush1.bf16.msra.mxu0 0
        %1198 = vmatprep.subr.bf16.mxu0 0
        %1199 = vmatpush1.bf16.msra.mxu0 0
        %1200 = vmatprep.subr.bf16.mxu0 0
        %1201 = vmatpush1.bf16.msra.mxu0 0
        %1202 = vmatprep.subr.bf16.mxu0 0
        %1203 = vmatpush1.bf16.msra.mxu0 0
        %1204 = vmatprep.subr.bf16.mxu0 0
        %1205 = vmatpush1.bf16.msra.mxu0 0
        %1206 = vmatprep.subr.bf16.mxu0 0
        %1207 = vmatpush1.bf16.msra.mxu0 0
        %1208 = vmatprep.subr.bf16.mxu0 0
        %1209 = vmatpush1.bf16.msra.mxu0 0
        %1210 = vmatprep.subr.bf16.mxu0 0
        %1211 = vmatpush1.bf16.msra.mxu0 0
        %1212 = vmatprep.subr.bf16.mxu0 0
        %1213 = vmatpush1.bf16.msra.mxu0 0
        %1214 = vmatprep.subr.bf16.mxu0 0
        %1215 = vmatpush1.bf16.msra.mxu0 0
        %1216 = vmatprep.subr.bf16.mxu0 0
        %1217 = vmatpush1.bf16.msra.mxu0 0
        %1218 = vmatprep.subr.bf16.mxu0 0
        %1219 = vmatpush1.bf16.msra.mxu0 0
        %1220 = vmatprep.mubr.bf16.mxu0 0
        %1221 = vmatmul.mubr.bf16.gmra.mrb[0].mxu0 %v1177
        %v1222 = vpop.f32.mrb[0].mxu0
        %v1223 = vadd.f32 %v1095, %v1222
        %v1224 = vpop.f32.mrb[0].mxu0
        %v1225 = vpop.f32.mrb[0].mxu0
        %v1226 = vadd.f32 %v1100, %v1225
        %v1227 = vpop.f32.mrb[0].mxu0
        %1228 = vmatprep.mubr.bf16.mxu0 0
        %1229 = vmatmul.mubr.bf16.gmra.mrb[0].mxu0 %v1180
        %v1230 = vpop.f32.mrb[0].mxu0
        %v1231 = vadd.f32 %v1105, %v1230
        %v1232 = vpop.f32.mrb[0].mxu0
        %v1233 = vpop.f32.mrb[0].mxu0
        %v1234 = vadd.f32 %v1110, %v1233
        %v1235 = vpop.f32.mrb[0].mxu0
        %1236 = vmatprep.mubr.bf16.mxu0 0
        %1237 = vmatmul.mubr.bf16.gmra.mrb[0].mxu0 %v1183
        %v1238 = vpop.f32.mrb[0].mxu0
        %v1239 = vadd.f32 %v1115, %v1238
        %v1240 = vpop.f32.mrb[0].mxu0
        %v1241 = vpop.f32.mrb[0].mxu0
        %v1242 = vadd.f32 %v1120, %v1241
        %v1243 = vpop.f32.mrb[0].mxu0
        %1244 = vmatprep.mubr.bf16.mxu0 0
        %1245 = vmatmul.mubr.bf16.gmra.mrb[0].mxu0 %v1186
        %v1246 = vpop.f32.mrb[0].mxu0
        %v1247 = vadd.f32 %v1125, %v1246
        %v1248 = vpop.f32.mrb[0].mxu0
        %v1249 = vpop.f32.mrb[0].mxu0
        %v1250 = vadd.f32 %v1130, %v1249
        %v1251 = vpop.f32.mrb[0].mxu0
        %1252 = vdwg.mxu0
        %v1253 = vpack.c.bf16 %v1041, %v1038
        %v1254 = vpack.c.bf16 %v1049, %v1046
        %v1255 = vpack.c.bf16 %v1057, %v1054
        %v1256 = vpack.c.bf16 %v1065, %v1062
        %v1257 = vpack.c.bf16 %v1226, %v1223
        %v1258 = vpack.c.bf16 %v1234, %v1231
        %v1259 = vpack.c.bf16 %v1242, %v1239
        %v1260 = vpack.c.bf16 %v1250, %v1247
        %v1261 = vld [vmem:[#allocation2] sm:$0xff]
        %v1262 = vld [vmem:[#allocation2 + $0x8] sm:$0xff]
        %v1263 = vld [vmem:[#allocation2 + $0x10] sm:$0xff]
        %v1264 = vld [vmem:[#allocation2 + $0x18] sm:$0xff]
        %v1265 = vld [vmem:[%s604] sm:$0xff]
        %1266 = vxpose.xlu0.c.b16.start [1/8] %v1261, 128
        %1267 = vxpose.xlu0.c.b16.cont [2/8] 0, 128
        %1268 = vxpose.xlu0.c.b16.cont [3/8] 0, 128
        %1269 = vxpose.xlu0.c.b16.cont [4/8] 0, 128
        %1270 = vxpose.xlu0.c.b16.cont [5/8] 0, 128
        %1271 = vxpose.xlu0.c.b16.cont [6/8] 0, 128
        %1272 = vxpose.xlu0.c.b16.cont [7/8] 0, 128
        %1273 = vxpose.xlu0.c.b16.end [8/8] 0, 128
        %v1274 = vpop.trf.xlu0
        %v1275 = vpop.trf.xlu0
        %v1276 = vpop.trf.xlu0
        %v1277 = vpop.trf.xlu0
        %v1278 = vpop.trf.xlu0
        %v1279 = vpop.trf.xlu0
        %v1280 = vpop.trf.xlu0
        %v1281 = vpop.trf.xlu0
        %vm1282 = vcmask 130048
        %v1284 = vsel %vm1282, %v1274, 0
        %1286 = vmatprep.subr.bf16.mxu0 0
        %1287 = vmatpush1.bf16.msra.mxu0 %v1253
        %1288 = vmatprep.subr.bf16.mxu0 0
        %1289 = vmatpush1.bf16.msra.mxu0 0
        %1290 = vmatprep.subr.bf16.mxu0 0
        %1291 = vmatpush1.bf16.msra.mxu0 0
        %1292 = vmatprep.subr.bf16.mxu0 0
        %1293 = vmatpush1.bf16.msra.mxu0 0
        %1294 = vmatprep.subr.bf16.mxu0 0
        %1295 = vmatpush1.bf16.msra.mxu0 0
        %1296 = vmatprep.subr.bf16.mxu0 0
        %1297 = vmatpush1.bf16.msra.mxu0 0
        %1298 = vmatprep.subr.bf16.mxu0 0
        %1299 = vmatpush1.bf16.msra.mxu0 0
        %1300 = vmatprep.subr.bf16.mxu0 0
        %1301 = vmatpush1.bf16.msra.mxu0 0
        %1302 = vmatprep.subr.bf16.mxu0 0
        %1303 = vmatpush1.bf16.msra.mxu0 0
        %1304 = vmatprep.subr.bf16.mxu0 0
        %1305 = vmatpush1.bf16.msra.mxu0 0
        %1306 = vmatprep.subr.bf16.mxu0 0
        %1307 = vmatpush1.bf16.msra.mxu0 0
        %1308 = vmatprep.subr.bf16.mxu0 0
        %1309 = vmatpush1.bf16.msra.mxu0 0
        %1310 = vmatprep.subr.bf16.mxu0 0
        %1311 = vmatpush1.bf16.msra.mxu0 0
        %1312 = vmatprep.subr.bf16.mxu0 0
        %1313 = vmatpush1.bf16.msra.mxu0 0
        %1314 = vmatprep.subr.bf16.mxu0 0
        %1315 = vmatpush1.bf16.msra.mxu0 0
        %1316 = vmatprep.subr.bf16.mxu0 0
        %1317 = vmatpush1.bf16.msra.mxu0 0
        %1318 = vmatprep.mubr.bf16.mxu0 0
        %1319 = vmatmul.mubr.bf16.gmra.mrb[0].mxu0 %v1284
        %v1320 = vpop.f32.mrb[0].mxu0
        %v1321 = vadd.f32 %v1265, %v1320
        %v1322 = vpop.f32.mrb[0].mxu0
        %v1323 = vpop.f32.mrb[0].mxu0
        %v1324 = vpop.f32.mrb[0].mxu0
        %1325 = vdwg.mxu0
        %1326 = vxpose.xlu0.c.b16.start [1/8] %v1262, 128
        %1327 = vxpose.xlu0.c.b16.cont [2/8] 0, 128
        %1328 = vxpose.xlu0.c.b16.cont [3/8] 0, 128
        %1329 = vxpose.xlu0.c.b16.cont [4/8] 0, 128
        %1330 = vxpose.xlu0.c.b16.cont [5/8] 0, 128
        %1331 = vxpose.xlu0.c.b16.cont [6/8] 0, 128
        %1332 = vxpose.xlu0.c.b16.cont [7/8] 0, 128
        %1333 = vxpose.xlu0.c.b16.end [8/8] 0, 128
        %v1334 = vpop.trf.xlu0
        %v1335 = vpop.trf.xlu0
        %v1336 = vpop.trf.xlu0
        %v1337 = vpop.trf.xlu0
        %v1338 = vpop.trf.xlu0
        %v1339 = vpop.trf.xlu0
        %v1340 = vpop.trf.xlu0
        %v1341 = vpop.trf.xlu0
        %v1343 = vsel %vm1282, %v1334, 0
        %1345 = vmatprep.subr.bf16.mxu0 0
        %1346 = vmatpush1.bf16.msra.mxu0 %v1254
        %1347 = vmatprep.subr.bf16.mxu0 0
        %1348 = vmatpush1.bf16.msra.mxu0 0
        %1349 = vmatprep.subr.bf16.mxu0 0
        %1350 = vmatpush1.bf16.msra.mxu0 0
        %1351 = vmatprep.subr.bf16.mxu0 0
        %1352 = vmatpush1.bf16.msra.mxu0 0
        %1353 = vmatprep.subr.bf16.mxu0 0
        %1354 = vmatpush1.bf16.msra.mxu0 0
        %1355 = vmatprep.subr.bf16.mxu0 0
        %1356 = vmatpush1.bf16.msra.mxu0 0
        %1357 = vmatprep.subr.bf16.mxu0 0
        %1358 = vmatpush1.bf16.msra.mxu0 0
        %1359 = vmatprep.subr.bf16.mxu0 0
        %1360 = vmatpush1.bf16.msra.mxu0 0
        %1361 = vmatprep.subr.bf16.mxu0 0
        %1362 = vmatpush1.bf16.msra.mxu0 0
        %1363 = vmatprep.subr.bf16.mxu0 0
        %1364 = vmatpush1.bf16.msra.mxu0 0
        %1365 = vmatprep.subr.bf16.mxu0 0
        %1366 = vmatpush1.bf16.msra.mxu0 0
        %1367 = vmatprep.subr.bf16.mxu0 0
        %1368 = vmatpush1.bf16.msra.mxu0 0
        %1369 = vmatprep.subr.bf16.mxu0 0
        %1370 = vmatpush1.bf16.msra.mxu0 0
        %1371 = vmatprep.subr.bf16.mxu0 0
        %1372 = vmatpush1.bf16.msra.mxu0 0
        %1373 = vmatprep.subr.bf16.mxu0 0
        %1374 = vmatpush1.bf16.msra.mxu0 0
        %1375 = vmatprep.subr.bf16.mxu0 0
        %1376 = vmatpush1.bf16.msra.mxu0 0
        %1377 = vmatprep.mubr.bf16.mxu0 0
        %1378 = vmatmul.mubr.bf16.gmra.mrb[0].mxu0 %v1343
        %v1379 = vpop.f32.mrb[0].mxu0
        %v1380 = vadd.f32 %v1265, %v1379
        %v1381 = vpop.f32.mrb[0].mxu0
        %v1382 = vpop.f32.mrb[0].mxu0
        %v1383 = vpop.f32.mrb[0].mxu0
        %1384 = vdwg.mxu0
        %1385 = vxpose.xlu0.c.b16.start [1/8] %v1263, 128
        %1386 = vxpose.xlu0.c.b16.cont [2/8] 0, 128
        %1387 = vxpose.xlu0.c.b16.cont [3/8] 0, 128
        %1388 = vxpose.xlu0.c.b16.cont [4/8] 0, 128
        %1389 = vxpose.xlu0.c.b16.cont [5/8] 0, 128
        %1390 = vxpose.xlu0.c.b16.cont [6/8] 0, 128
        %1391 = vxpose.xlu0.c.b16.cont [7/8] 0, 128
        %1392 = vxpose.xlu0.c.b16.end [8/8] 0, 128
        %v1393 = vpop.trf.xlu0
        %v1394 = vpop.trf.xlu0
        %v1395 = vpop.trf.xlu0
        %v1396 = vpop.trf.xlu0
        %v1397 = vpop.trf.xlu0
        %v1398 = vpop.trf.xlu0
        %v1399 = vpop.trf.xlu0
        %v1400 = vpop.trf.xlu0
        %v1402 = vsel %vm1282, %v1393, 0
        %1404 = vmatprep.subr.bf16.mxu0 0
        %1405 = vmatpush1.bf16.msra.mxu0 %v1255
        %1406 = vmatprep.subr.bf16.mxu0 0
        %1407 = vmatpush1.bf16.msra.mxu0 0
        %1408 = vmatprep.subr.bf16.mxu0 0
        %1409 = vmatpush1.bf16.msra.mxu0 0
        %1410 = vmatprep.subr.bf16.mxu0 0
        %1411 = vmatpush1.bf16.msra.mxu0 0
        %1412 = vmatprep.subr.bf16.mxu0 0
        %1413 = vmatpush1.bf16.msra.mxu0 0
        %1414 = vmatprep.subr.bf16.mxu0 0
        %1415 = vmatpush1.bf16.msra.mxu0 0
        %1416 = vmatprep.subr.bf16.mxu0 0
        %1417 = vmatpush1.bf16.msra.mxu0 0
        %1418 = vmatprep.subr.bf16.mxu0 0
        %1419 = vmatpush1.bf16.msra.mxu0 0
        %1420 = vmatprep.subr.bf16.mxu0 0
        %1421 = vmatpush1.bf16.msra.mxu0 0
        %1422 = vmatprep.subr.bf16.mxu0 0
        %1423 = vmatpush1.bf16.msra.mxu0 0
        %1424 = vmatprep.subr.bf16.mxu0 0
        %1425 = vmatpush1.bf16.msra.mxu0 0
        %1426 = vmatprep.subr.bf16.mxu0 0
        %1427 = vmatpush1.bf16.msra.mxu0 0
        %1428 = vmatprep.subr.bf16.mxu0 0
        %1429 = vmatpush1.bf16.msra.mxu0 0
        %1430 = vmatprep.subr.bf16.mxu0 0
        %1431 = vmatpush1.bf16.msra.mxu0 0
        %1432 = vmatprep.subr.bf16.mxu0 0
        %1433 = vmatpush1.bf16.msra.mxu0 0
        %1434 = vmatprep.subr.bf16.mxu0 0
        %1435 = vmatpush1.bf16.msra.mxu0 0
        %1436 = vmatprep.mubr.bf16.mxu0 0
        %1437 = vmatmul.mubr.bf16.gmra.mrb[0].mxu0 %v1402
        %v1438 = vpop.f32.mrb[0].mxu0
        %v1439 = vadd.f32 %v1265, %v1438
        %v1440 = vpop.f32.mrb[0].mxu0
        %v1441 = vpop.f32.mrb[0].mxu0
        %v1442 = vpop.f32.mrb[0].mxu0
        %1443 = vdwg.mxu0
        %1444 = vxpose.xlu0.c.b16.start [1/8] %v1264, 128
        %1445 = vxpose.xlu0.c.b16.cont [2/8] 0, 128
        %1446 = vxpose.xlu0.c.b16.cont [3/8] 0, 128
        %1447 = vxpose.xlu0.c.b16.cont [4/8] 0, 128
        %1448 = vxpose.xlu0.c.b16.cont [5/8] 0, 128
        %1449 = vxpose.xlu0.c.b16.cont [6/8] 0, 128
        %1450 = vxpose.xlu0.c.b16.cont [7/8] 0, 128
        %1451 = vxpose.xlu0.c.b16.end [8/8] 0, 128
        %v1452 = vpop.trf.xlu0
        %v1453 = vpop.trf.xlu0
        %v1454 = vpop.trf.xlu0
        %v1455 = vpop.trf.xlu0
        %v1456 = vpop.trf.xlu0
        %v1457 = vpop.trf.xlu0
        %v1458 = vpop.trf.xlu0
        %v1459 = vpop.trf.xlu0
        %v1461 = vsel %vm1282, %v1452, 0
        %1463 = vmatprep.subr.bf16.mxu0 0
        %1464 = vmatpush1.bf16.msra.mxu0 %v1256
        %1465 = vmatprep.subr.bf16.mxu0 0
        %1466 = vmatpush1.bf16.msra.mxu0 0
        %1467 = vmatprep.subr.bf16.mxu0 0
        %1468 = vmatpush1.bf16.msra.mxu0 0
        %1469 = vmatprep.subr.bf16.mxu0 0
        %1470 = vmatpush1.bf16.msra.mxu0 0
        %1471 = vmatprep.subr.bf16.mxu0 0
        %1472 = vmatpush1.bf16.msra.mxu0 0
        %1473 = vmatprep.subr.bf16.mxu0 0
        %1474 = vmatpush1.bf16.msra.mxu0 0
        %1475 = vmatprep.subr.bf16.mxu0 0
        %1476 = vmatpush1.bf16.msra.mxu0 0
        %1477 = vmatprep.subr.bf16.mxu0 0
        %1478 = vmatpush1.bf16.msra.mxu0 0
        %1479 = vmatprep.subr.bf16.mxu0 0
        %1480 = vmatpush1.bf16.msra.mxu0 0
        %1481 = vmatprep.subr.bf16.mxu0 0
        %1482 = vmatpush1.bf16.msra.mxu0 0
        %1483 = vmatprep.subr.bf16.mxu0 0
        %1484 = vmatpush1.bf16.msra.mxu0 0
        %1485 = vmatprep.subr.bf16.mxu0 0
        %1486 = vmatpush1.bf16.msra.mxu0 0
        %1487 = vmatprep.subr.bf16.mxu0 0
        %1488 = vmatpush1.bf16.msra.mxu0 0
        %1489 = vmatprep.subr.bf16.mxu0 0
        %1490 = vmatpush1.bf16.msra.mxu0 0
        %1491 = vmatprep.subr.bf16.mxu0 0
        %1492 = vmatpush1.bf16.msra.mxu0 0
        %1493 = vmatprep.subr.bf16.mxu0 0
        %1494 = vmatpush1.bf16.msra.mxu0 0
        %1495 = vmatprep.mubr.bf16.mxu0 0
        %1496 = vmatmul.mubr.bf16.gmra.mrb[0].mxu0 %v1461
        %v1497 = vpop.f32.mrb[0].mxu0
        %v1498 = vadd.f32 %v1265, %v1497
        %v1499 = vpop.f32.mrb[0].mxu0
        %v1500 = vpop.f32.mrb[0].mxu0
        %v1501 = vpop.f32.mrb[0].mxu0
        %1502 = vdwg.mxu0
        %v1503 = vld [vmem:[#allocation3] sm:$0xff]
        %v1504 = vld [vmem:[#allocation3 + $0x8] sm:$0xff]
        %v1505 = vld [vmem:[#allocation3 + $0x10] sm:$0xff]
        %v1506 = vld [vmem:[#allocation3 + $0x18] sm:$0xff]
        %1507 = vmax.xlane.f32.xlu0 %v1321
        %v1508 = vpop.xlane.xlu0 %1507
        %1509 = vmax.xlane.f32.xlu0 %v1380
        %v1510 = vpop.xlane.xlu0 %1509
        %1511 = vmax.xlane.f32.xlu0 %v1439
        %v1512 = vpop.xlane.xlu0 %1511
        %1513 = vmax.xlane.f32.xlu0 %v1498
        %v1514 = vpop.xlane.xlu0 %1513
        %v1515 = vmax.f32 %v1503, %v1508
        %v1516 = vmax.f32 %v1504, %v1510
        %v1517 = vmax.f32 %v1505, %v1512
        %v1518 = vmax.f32 %v1506, %v1514
        %v1519 = vsub.f32 %v1503, %v1515
        %v1520 = vsub.f32 %v1504, %v1516
        %v1521 = vsub.f32 %v1505, %v1517
        %v1522 = vsub.f32 %v1506, %v1518
        %v1523 = vmul.f32 %v1519, 1.442695
        %v1524 = vpow.pop %v1523
        %v1525 = vmul.f32 %v1520, 1.442695
        %v1526 = vpow.pop %v1525
        %v1527 = vmul.f32 %v1521, 1.442695
        %v1528 = vpow.pop %v1527
        %v1529 = vmul.f32 %v1522, 1.442695
        %v1530 = vpow.pop %v1529
        %1532 = vset.pattern.permute.xlu0 0
        %1533 = vperm.xlu0 %1532, %v1515
        %v1534 = vpop.permute.xlu0 %1533
        %1537 = vset.pattern.permute.xlu0 0
        %1538 = vperm.xlu0 %1537, %v1516
        %v1539 = vpop.permute.xlu0 %1538
        %1542 = vset.pattern.permute.xlu0 0
        %1543 = vperm.xlu0 %1542, %v1517
        %v1544 = vpop.permute.xlu0 %1543
        %1547 = vset.pattern.permute.xlu0 0
        %1548 = vperm.xlu0 %1547, %v1518
        %v1549 = vpop.permute.xlu0 %1548
        %v1551 = vsub.f32 %v1321, %v1534
        %v1552 = vsub.f32 %v1380, %v1539
        %v1553 = vsub.f32 %v1439, %v1544
        %v1554 = vsub.f32 %v1498, %v1549
        %v1555 = vmul.f32 %v1551, 1.442695
        %v1556 = vpow.pop %v1555
        %v1557 = vmul.f32 %v1552, 1.442695
        %v1558 = vpow.pop %v1557
        %v1559 = vmul.f32 %v1553, 1.442695
        %v1560 = vpow.pop %v1559
        %v1561 = vmul.f32 %v1554, 1.442695
        %v1562 = vpow.pop %v1561
        %v1563 = vld [vmem:[#allocation4] sm:$0xff]
        %v1564 = vld [vmem:[#allocation4 + $0x8] sm:$0xff]
        %v1565 = vld [vmem:[#allocation4 + $0x10] sm:$0xff]
        %v1566 = vld [vmem:[#allocation4 + $0x18] sm:$0xff]
        %v1567 = vmul.f32 %v1524, %v1563
        %v1568 = vmul.f32 %v1526, %v1564
        %v1569 = vmul.f32 %v1528, %v1565
        %v1570 = vmul.f32 %v1530, %v1566
        %1571 = vadd.xlane.f32.xlu0 %v1556
        %v1572 = vpop.xlane.xlu0 %1571
        %1573 = vadd.xlane.f32.xlu0 %v1558
        %v1574 = vpop.xlane.xlu0 %1573
        %1575 = vadd.xlane.f32.xlu0 %v1560
        %v1576 = vpop.xlane.xlu0 %1575
        %1577 = vadd.xlane.f32.xlu0 %v1562
        %v1578 = vpop.xlane.xlu0 %1577
        %v1579 = vadd.f32 %v1567, %v1572
        %v1580 = vadd.f32 %v1568, %v1574
        %v1581 = vadd.f32 %v1569, %v1576
        %v1582 = vadd.f32 %v1570, %v1578
        %vm1583 = vcmask 7168
        %1584 = vst.msk [vmem:[#allocation4] sm:$0xff] %vm1583, %v1579
        %1585 = vst.msk [vmem:[#allocation4 + $0x8] sm:$0xff] %vm1583, %v1580
        %1586 = vst.msk [vmem:[#allocation4 + $0x10] sm:$0xff] %vm1583, %v1581
        %1587 = vst.msk [vmem:[#allocation4 + $0x18] sm:$0xff] %vm1583, %v1582
        %v1588 = vpack.c.bf16 %v1556, %v1556
        %v1589 = vpack.c.bf16 %v1558, %v1558
        %v1590 = vpack.c.bf16 %v1560, %v1560
        %v1591 = vpack.c.bf16 %v1562, %v1562
        %1592 = vmatprep.subr.bf16.mxu0 0
        %1593 = vmatpush1.bf16.xpose.msra.mxu0 %v1257
        %1594 = vmatprep.subr.bf16.mxu0 0
        %1595 = vmatpush1.bf16.xpose.msra.mxu0 0
        %1596 = vmatprep.subr.bf16.mxu0 0
        %1597 = vmatpush1.bf16.xpose.msra.mxu0 0
        %1598 = vmatprep.subr.bf16.mxu0 0
        %1599 = vmatpush1.bf16.xpose.msra.mxu0 0
        %1600 = vmatprep.subr.bf16.mxu0 0
        %1601 = vmatpush1.bf16.xpose.msra.mxu0 0
        %1602 = vmatprep.subr.bf16.mxu0 0
        %1603 = vmatpush1.bf16.xpose.msra.mxu0 0
        %1604 = vmatprep.subr.bf16.mxu0 0
        %1605 = vmatpush1.bf16.xpose.msra.mxu0 0
        %1606 = vmatprep.subr.bf16.mxu0 0
        %1607 = vmatpush1.bf16.xpose.msra.mxu0 0
        %1608 = vmatprep.subr.bf16.mxu0 0
        %1609 = vmatpush1.bf16.xpose.msra.mxu0 0
        %1610 = vmatprep.subr.bf16.mxu0 0
        %1611 = vmatpush1.bf16.xpose.msra.mxu0 0
        %1612 = vmatprep.subr.bf16.mxu0 0
        %1613 = vmatpush1.bf16.xpose.msra.mxu0 0
        %1614 = vmatprep.subr.bf16.mxu0 0
        %1615 = vmatpush1.bf16.xpose.msra.mxu0 0
        %1616 = vmatprep.subr.bf16.mxu0 0
        %1617 = vmatpush1.bf16.xpose.msra.mxu0 0
        %1618 = vmatprep.subr.bf16.mxu0 0
        %1619 = vmatpush1.bf16.xpose.msra.mxu0 0
        %1620 = vmatprep.subr.bf16.mxu0 0
        %1621 = vmatpush1.bf16.xpose.msra.mxu0 0
        %1622 = vmatprep.subr.bf16.mxu0 0
        %1623 = vmatpush1.bf16.xpose.msra.mxu0 0
        %1624 = vmatprep.mubr.bf16.mxu0 0
        %1625 = vmatmul.mubr.bf16.gmra.mrb[0].mxu0 %v1588
        %v1626 = vpop.f32.mrb[0].mxu0
        %v1627 = vadd.f32 0.0, %v1626
        %v1628 = vpop.f32.mrb[0].mxu0
        %v1629 = vpop.f32.mrb[0].mxu0
        %v1630 = vpop.f32.mrb[0].mxu0
        %1631 = vdwg.mxu0
        %1632 = vmatprep.subr.bf16.mxu0 0
        %1633 = vmatpush1.bf16.xpose.msra.mxu0 %v1258
        %1634 = vmatprep.subr.bf16.mxu0 0
        %1635 = vmatpush1.bf16.xpose.msra.mxu0 0
        %1636 = vmatprep.subr.bf16.mxu0 0
        %1637 = vmatpush1.bf16.xpose.msra.mxu0 0
        %1638 = vmatprep.subr.bf16.mxu0 0
        %1639 = vmatpush1.bf16.xpose.msra.mxu0 0
        %1640 = vmatprep.subr.bf16.mxu0 0
        %1641 = vmatpush1.bf16.xpose.msra.mxu0 0
        %1642 = vmatprep.subr.bf16.mxu0 0
        %1643 = vmatpush1.bf16.xpose.msra.mxu0 0
        %1644 = vmatprep.subr.bf16.mxu0 0
        %1645 = vmatpush1.bf16.xpose.msra.mxu0 0
        %1646 = vmatprep.subr.bf16.mxu0 0
        %1647 = vmatpush1.bf16.xpose.msra.mxu0 0
        %1648 = vmatprep.subr.bf16.mxu0 0
        %1649 = vmatpush1.bf16.xpose.msra.mxu0 0
        %1650 = vmatprep.subr.bf16.mxu0 0
        %1651 = vmatpush1.bf16.xpose.msra.mxu0 0
        %1652 = vmatprep.subr.bf16.mxu0 0
        %1653 = vmatpush1.bf16.xpose.msra.mxu0 0
        %1654 = vmatprep.subr.bf16.mxu0 0
        %1655 = vmatpush1.bf16.xpose.msra.mxu0 0
        %1656 = vmatprep.subr.bf16.mxu0 0
        %1657 = vmatpush1.bf16.xpose.msra.mxu0 0
        %1658 = vmatprep.subr.bf16.mxu0 0
        %1659 = vmatpush1.bf16.xpose.msra.mxu0 0
        %1660 = vmatprep.subr.bf16.mxu0 0
        %1661 = vmatpush1.bf16.xpose.msra.mxu0 0
        %1662 = vmatprep.subr.bf16.mxu0 0
        %1663 = vmatpush1.bf16.xpose.msra.mxu0 0
        %1664 = vmatprep.mubr.bf16.mxu0 0
        %1665 = vmatmul.mubr.bf16.gmra.mrb[0].mxu0 %v1589
        %v1666 = vpop.f32.mrb[0].mxu0
        %v1667 = vadd.f32 0.0, %v1666
        %v1668 = vpop.f32.mrb[0].mxu0
        %v1669 = vpop.f32.mrb[0].mxu0
        %v1670 = vpop.f32.mrb[0].mxu0
        %1671 = vdwg.mxu0
        %1672 = vmatprep.subr.bf16.mxu0 0
        %1673 = vmatpush1.bf16.xpose.msra.mxu0 %v1259
        %1674 = vmatprep.subr.bf16.mxu0 0
        %1675 = vmatpush1.bf16.xpose.msra.mxu0 0
        %1676 = vmatprep.subr.bf16.mxu0 0
        %1677 = vmatpush1.bf16.xpose.msra.mxu0 0
        %1678 = vmatprep.subr.bf16.mxu0 0
        %1679 = vmatpush1.bf16.xpose.msra.mxu0 0
        %1680 = vmatprep.subr.bf16.mxu0 0
        %1681 = vmatpush1.bf16.xpose.msra.mxu0 0
        %1682 = vmatprep.subr.bf16.mxu0 0
        %1683 = vmatpush1.bf16.xpose.msra.mxu0 0
        %1684 = vmatprep.subr.bf16.mxu0 0
        %1685 = vmatpush1.bf16.xpose.msra.mxu0 0
        %1686 = vmatprep.subr.bf16.mxu0 0
        %1687 = vmatpush1.bf16.xpose.msra.mxu0 0
        %1688 = vmatprep.subr.bf16.mxu0 0
        %1689 = vmatpush1.bf16.xpose.msra.mxu0 0
        %1690 = vmatprep.subr.bf16.mxu0 0
        %1691 = vmatpush1.bf16.xpose.msra.mxu0 0
        %1692 = vmatprep.subr.bf16.mxu0 0
        %1693 = vmatpush1.bf16.xpose.msra.mxu0 0
        %1694 = vmatprep.subr.bf16.mxu0 0
        %1695 = vmatpush1.bf16.xpose.msra.mxu0 0
        %1696 = vmatprep.subr.bf16.mxu0 0
        %1697 = vmatpush1.bf16.xpose.msra.mxu0 0
        %1698 = vmatprep.subr.bf16.mxu0 0
        %1699 = vmatpush1.bf16.xpose.msra.mxu0 0
        %1700 = vmatprep.subr.bf16.mxu0 0
        %1701 = vmatpush1.bf16.xpose.msra.mxu0 0
        %1702 = vmatprep.subr.bf16.mxu0 0
        %1703 = vmatpush1.bf16.xpose.msra.mxu0 0
        %1704 = vmatprep.mubr.bf16.mxu0 0
        %1705 = vmatmul.mubr.bf16.gmra.mrb[0].mxu0 %v1590
        %v1706 = vpop.f32.mrb[0].mxu0
        %v1707 = vadd.f32 0.0, %v1706
        %v1708 = vpop.f32.mrb[0].mxu0
        %v1709 = vpop.f32.mrb[0].mxu0
        %v1710 = vpop.f32.mrb[0].mxu0
        %1711 = vdwg.mxu0
        %1712 = vmatprep.subr.bf16.mxu0 0
        %1713 = vmatpush1.bf16.xpose.msra.mxu0 %v1260
        %1714 = vmatprep.subr.bf16.mxu0 0
        %1715 = vmatpush1.bf16.xpose.msra.mxu0 0
        %1716 = vmatprep.subr.bf16.mxu0 0
        %1717 = vmatpush1.bf16.xpose.msra.mxu0 0
        %1718 = vmatprep.subr.bf16.mxu0 0
        %1719 = vmatpush1.bf16.xpose.msra.mxu0 0
        %1720 = vmatprep.subr.bf16.mxu0 0
        %1721 = vmatpush1.bf16.xpose.msra.mxu0 0
        %1722 = vmatprep.subr.bf16.mxu0 0
        %1723 = vmatpush1.bf16.xpose.msra.mxu0 0
        %1724 = vmatprep.subr.bf16.mxu0 0
        %1725 = vmatpush1.bf16.xpose.msra.mxu0 0
        %1726 = vmatprep.subr.bf16.mxu0 0
        %1727 = vmatpush1.bf16.xpose.msra.mxu0 0
        %1728 = vmatprep.subr.bf16.mxu0 0
        %1729 = vmatpush1.bf16.xpose.msra.mxu0 0
        %1730 = vmatprep.subr.bf16.mxu0 0
        %1731 = vmatpush1.bf16.xpose.msra.mxu0 0
        %1732 = vmatprep.subr.bf16.mxu0 0
        %1733 = vmatpush1.bf16.xpose.msra.mxu0 0
        %1734 = vmatprep.subr.bf16.mxu0 0
        %1735 = vmatpush1.bf16.xpose.msra.mxu0 0
        %1736 = vmatprep.subr.bf16.mxu0 0
        %1737 = vmatpush1.bf16.xpose.msra.mxu0 0
        %1738 = vmatprep.subr.bf16.mxu0 0
        %1739 = vmatpush1.bf16.xpose.msra.mxu0 0
        %1740 = vmatprep.subr.bf16.mxu0 0
        %1741 = vmatpush1.bf16.xpose.msra.mxu0 0
        %1742 = vmatprep.subr.bf16.mxu0 0
        %1743 = vmatpush1.bf16.xpose.msra.mxu0 0
        %1744 = vmatprep.mubr.bf16.mxu0 0
        %1745 = vmatmul.mubr.bf16.gmra.mrb[0].mxu0 %v1591
        %v1746 = vpop.f32.mrb[0].mxu0
        %v1747 = vadd.f32 0.0, %v1746
        %v1748 = vpop.f32.mrb[0].mxu0
        %v1749 = vpop.f32.mrb[0].mxu0
        %v1750 = vpop.f32.mrb[0].mxu0
        %1751 = vdwg.mxu0
        %v1752 = vld [vmem:[#allocation5] sm:$0xff]
        %v1753 = vld [vmem:[#allocation5 + $0x8] sm:$0xff]
        %v1754 = vld [vmem:[#allocation5 + $0x10] sm:$0xff]
        %v1755 = vld [vmem:[#allocation5 + $0x18] sm:$0xff]
        %1757 = vset.pattern.permute.xlu0 0
        %1758 = vperm.xlu0 %1757, %v1524
        %v1759 = vpop.permute.xlu0 %1758
        %1762 = vset.pattern.permute.xlu0 0
        %1763 = vperm.xlu0 %1762, %v1526
        %v1764 = vpop.permute.xlu0 %1763
        %1767 = vset.pattern.permute.xlu0 0
        %1768 = vperm.xlu0 %1767, %v1528
        %v1769 = vpop.permute.xlu0 %1768
        %1772 = vset.pattern.permute.xlu0 0
        %1773 = vperm.xlu0 %1772, %v1530
        %v1774 = vpop.permute.xlu0 %1773
        %v1776 = vmul.f32 %v1759, %v1752
        %v1777 = vmul.f32 %v1764, %v1753
        %v1778 = vmul.f32 %v1769, %v1754
        %v1779 = vmul.f32 %v1774, %v1755
        %v1780 = vadd.f32 %v1776, %v1627
        %v1781 = vadd.f32 %v1777, %v1667
        %v1782 = vadd.f32 %v1778, %v1707
        %v1783 = vadd.f32 %v1779, %v1747
        %1784 = vst.msk [vmem:[#allocation5] sm:$0xff] %vm1282, %v1780
        %1785 = vst.msk [vmem:[#allocation5 + $0x8] sm:$0xff] %vm1282, %v1781
        %1786 = vst.msk [vmem:[#allocation5 + $0x10] sm:$0xff] %vm1282, %v1782
        %1787 = vst.msk [vmem:[#allocation5 + $0x18] sm:$0xff] %vm1282, %v1783
        %1788 = vst.msk [vmem:[#allocation3] sm:$0xff] %vm1583, %v1515
        %1789 = vst.msk [vmem:[#allocation3 + $0x8] sm:$0xff] %vm1583, %v1516
        %1790 = vst.msk [vmem:[#allocation3 + $0x10] sm:$0xff] %vm1583, %v1517
        %1791 = vst.msk [vmem:[#allocation3 + $0x18] sm:$0xff] %vm1583, %v1518
        %p1792 = scmp.eq.s32.totalorder %s32, 1
        // Predicated region
        $region163: #{tpu_custom_call.1} parent=141 // pred_check
          %p1793 = pneg %p1792
        $region164: #{tpu_custom_call.1} parent=141 // pred_check_branch
          %1795 = sbr.rel (%p1793) target = $region166
        $region165: #{tpu_custom_call.1} parent=141 // pred_region
          %v1796 = vld [vmem:[#allocation4] sm:$0xff]
          %v1797 = vld [vmem:[#allocation4 + $0x8] sm:$0xff]
          %v1798 = vld [vmem:[#allocation4 + $0x10] sm:$0xff]
          %v1799 = vld [vmem:[#allocation4 + $0x18] sm:$0xff]
          %v1800 = vrcp.pop %v1796
          %v1801 = vrcp.pop %v1797
          %v1802 = vrcp.pop %v1798
          %v1803 = vrcp.pop %v1799
          %v1804 = vld [vmem:[#allocation5] sm:$0xff]
          %v1805 = vld [vmem:[#allocation5 + $0x8] sm:$0xff]
          %v1806 = vld [vmem:[#allocation5 + $0x10] sm:$0xff]
          %v1807 = vld [vmem:[#allocation5 + $0x18] sm:$0xff]
          %1809 = vset.pattern.permute.xlu0 0
          %1810 = vperm.xlu0 %1809, %v1800
          %v1811 = vpop.permute.xlu0 %1810
          %1814 = vset.pattern.permute.xlu0 0
          %1815 = vperm.xlu0 %1814, %v1801
          %v1816 = vpop.permute.xlu0 %1815
          %1819 = vset.pattern.permute.xlu0 0
          %1820 = vperm.xlu0 %1819, %v1802
          %v1821 = vpop.permute.xlu0 %1820
          %1824 = vset.pattern.permute.xlu0 0
          %1825 = vperm.xlu0 %1824, %v1803
          %v1826 = vpop.permute.xlu0 %1825
          %v1828 = vmul.f32 %v1804, %v1811
          %v1829 = vmul.f32 %v1805, %v1816
          %v1830 = vmul.f32 %v1806, %v1821
          %v1831 = vmul.f32 %v1807, %v1826
          %v1832 = vpack.c.bf16 %v1828, %v1828
          %v1833 = vpack.c.bf16 %v1829, %v1829
          %v1834 = vpack.c.bf16 %v1830, %v1830
          %v1835 = vpack.c.bf16 %v1831, %v1831
          %1836 = vxpose.xlu0.c.b16.start [1/8] %v1832, 128
          %1837 = vxpose.xlu0.c.b16.cont [2/8] 0, 128
          %1838 = vxpose.xlu0.c.b16.cont [3/8] 0, 128
          %1839 = vxpose.xlu0.c.b16.cont [4/8] 0, 128
          %1840 = vxpose.xlu0.c.b16.cont [5/8] 0, 128
          %1841 = vxpose.xlu0.c.b16.cont [6/8] 0, 128
          %1842 = vxpose.xlu0.c.b16.cont [7/8] 0, 128
          %1843 = vxpose.xlu0.c.b16.end [8/8] 0, 128
          %v1844 = vpop.trf.xlu0
          %v1845 = vpop.trf.xlu0
          %v1846 = vpop.trf.xlu0
          %v1847 = vpop.trf.xlu0
          %v1848 = vpop.trf.xlu0
          %v1849 = vpop.trf.xlu0
          %v1850 = vpop.trf.xlu0
          %v1851 = vpop.trf.xlu0
          %1852 = vxpose.xlu0.c.b16.start [1/8] %v1833, 128
          %1853 = vxpose.xlu0.c.b16.cont [2/8] 0, 128
          %1854 = vxpose.xlu0.c.b16.cont [3/8] 0, 128
          %1855 = vxpose.xlu0.c.b16.cont [4/8] 0, 128
          %1856 = vxpose.xlu0.c.b16.cont [5/8] 0, 128
          %1857 = vxpose.xlu0.c.b16.cont [6/8] 0, 128
          %1858 = vxpose.xlu0.c.b16.cont [7/8] 0, 128
          %1859 = vxpose.xlu0.c.b16.end [8/8] 0, 128
          %v1860 = vpop.trf.xlu0
          %v1861 = vpop.trf.xlu0
          %v1862 = vpop.trf.xlu0
          %v1863 = vpop.trf.xlu0
          %v1864 = vpop.trf.xlu0
          %v1865 = vpop.trf.xlu0
          %v1866 = vpop.trf.xlu0
          %v1867 = vpop.trf.xlu0
          %1868 = vxpose.xlu0.c.b16.start [1/8] %v1834, 128
          %1869 = vxpose.xlu0.c.b16.cont [2/8] 0, 128
          %1870 = vxpose.xlu0.c.b16.cont [3/8] 0, 128
          %1871 = vxpose.xlu0.c.b16.cont [4/8] 0, 128
          %1872 = vxpose.xlu0.c.b16.cont [5/8] 0, 128
          %1873 = vxpose.xlu0.c.b16.cont [6/8] 0, 128
          %1874 = vxpose.xlu0.c.b16.cont [7/8] 0, 128
          %1875 = vxpose.xlu0.c.b16.end [8/8] 0, 128
          %v1876 = vpop.trf.xlu0
          %v1877 = vpop.trf.xlu0
          %v1878 = vpop.trf.xlu0
          %v1879 = vpop.trf.xlu0
          %v1880 = vpop.trf.xlu0
          %v1881 = vpop.trf.xlu0
          %v1882 = vpop.trf.xlu0
          %v1883 = vpop.trf.xlu0
          %1884 = vxpose.xlu0.c.b16.start [1/8] %v1835, 128
          %1885 = vxpose.xlu0.c.b16.cont [2/8] 0, 128
          %1886 = vxpose.xlu0.c.b16.cont [3/8] 0, 128
          %1887 = vxpose.xlu0.c.b16.cont [4/8] 0, 128
          %1888 = vxpose.xlu0.c.b16.cont [5/8] 0, 128
          %1889 = vxpose.xlu0.c.b16.cont [6/8] 0, 128
          %1890 = vxpose.xlu0.c.b16.cont [7/8] 0, 128
          %1891 = vxpose.xlu0.c.b16.end [8/8] 0, 128
          %v1892 = vpop.trf.xlu0
          %v1893 = vpop.trf.xlu0
          %v1894 = vpop.trf.xlu0
          %v1895 = vpop.trf.xlu0
          %v1896 = vpop.trf.xlu0
          %v1897 = vpop.trf.xlu0
          %v1898 = vpop.trf.xlu0
          %v1899 = vpop.trf.xlu0
          %v1900 = vld [vmem:[#allocation8] sm:$0xf]
          %v1901 = vld [vmem:[#allocation8 + $0x4] sm:$0xf]
          %v1902 = vld [vmem:[#allocation8 + $0x8] sm:$0xf]
          %v1903 = vld [vmem:[#allocation8 + $0xc] sm:$0xf]
          %v1904 = vld [vmem:[#allocation8 + $0x10] sm:$0xf]
          %v1905 = vld [vmem:[#allocation8 + $0x14] sm:$0xf]
          %v1906 = vld [vmem:[#allocation8 + $0x18] sm:$0xf]
          %v1907 = vld [vmem:[#allocation8 + $0x1c] sm:$0xf]
          %v1908 = vld [vmem:[%s10] sm:$0xff]
          %v1909 = vld [vmem:[%s10 + $0x8] sm:$0xff]
          %v1910 = vld [vmem:[%s10 + $0x10] sm:$0xff]
          %v1911 = vld [vmem:[%s10 + $0x18] sm:$0xff]
          %v1912 = vld [vmem:[%s10 + $0x20] sm:$0xff]
          %v1913 = vld [vmem:[%s10 + $0x28] sm:$0xff]
          %v1914 = vld [vmem:[%s10 + $0x30] sm:$0xff]
          %v1915 = vld [vmem:[%s10 + $0x38] sm:$0xff]
          %1917 = vset.pattern.permute.xlu0 0
          %1918 = vperm.xlu0 %1917, %v1908
          %v1919 = vpop.permute.xlu0 %1918
          %1922 = vset.pattern.permute.xlu0 0
          %1923 = vperm.xlu0 %1922, %v1909
          %v1924 = vpop.permute.xlu0 %1923
          %1927 = vset.pattern.permute.xlu0 0
          %1928 = vperm.xlu0 %1927, %v1910
          %v1929 = vpop.permute.xlu0 %1928
          %1932 = vset.pattern.permute.xlu0 0
          %1933 = vperm.xlu0 %1932, %v1911
          %v1934 = vpop.permute.xlu0 %1933
          %1937 = vset.pattern.permute.xlu0 0
          %1938 = vperm.xlu0 %1937, %v1912
          %v1939 = vpop.permute.xlu0 %1938
          %1942 = vset.pattern.permute.xlu0 0
          %1943 = vperm.xlu0 %1942, %v1913
          %v1944 = vpop.permute.xlu0 %1943
          %1947 = vset.pattern.permute.xlu0 0
          %1948 = vperm.xlu0 %1947, %v1914
          %v1949 = vpop.permute.xlu0 %1948
          %1952 = vset.pattern.permute.xlu0 0
          %1953 = vperm.xlu0 %1952, %v1915
          %v1954 = vpop.permute.xlu0 %1953
          %v1964 = vunpack.c.l.b16 %v1900
          %v1965 = vunpack.c.l.b16 %v1901
          %v1966 = vunpack.c.l.b16 %v1902
          %v1967 = vunpack.c.l.b16 %v1903
          %v1968 = vunpack.c.l.b16 %v1904
          %v1969 = vunpack.c.l.b16 %v1905
          %v1970 = vunpack.c.l.b16 %v1906
          %v1971 = vunpack.c.l.b16 %v1907
          %v1972 = vpack.c.b16 %v1965, %v1964
          %v1973 = vpack.c.b16 %v1967, %v1966
          %v1974 = vpack.c.b16 %v1969, %v1968
          %v1975 = vpack.c.b16 %v1971, %v1970
          %v1977 = vsel %vm990, %v1972, 0
          %v1980 = vsel %vm990, %v1973, 0
          %v1983 = vsel %vm990, %v1974, 0
          %v1986 = vsel %vm990, %v1975, 0
          %1988 = vmatprep.subr.bf16.mxu0 0
          %1989 = vmatpush1.bf16.msra.mxu0 %v1844
          %1990 = vmatprep.subr.bf16.mxu0 0
          %1991 = vmatpush1.bf16.msra.mxu0 %v1860
          %1992 = vmatprep.subr.bf16.mxu0 0
          %1993 = vmatpush1.bf16.msra.mxu0 %v1876
          %1994 = vmatprep.subr.bf16.mxu0 0
          %1995 = vmatpush1.bf16.msra.mxu0 %v1892
          %1996 = vmatprep.subr.bf16.mxu0 0
          %1997 = vmatpush1.bf16.msra.mxu0 0
          %1998 = vmatprep.subr.bf16.mxu0 0
          %1999 = vmatpush1.bf16.msra.mxu0 0
          %2000 = vmatprep.subr.bf16.mxu0 0
          %2001 = vmatpush1.bf16.msra.mxu0 0
          %2002 = vmatprep.subr.bf16.mxu0 0
          %2003 = vmatpush1.bf16.msra.mxu0 0
          %2004 = vmatprep.subr.bf16.mxu0 0
          %2005 = vmatpush1.bf16.msra.mxu0 0
          %2006 = vmatprep.subr.bf16.mxu0 0
          %2007 = vmatpush1.bf16.msra.mxu0 0
          %2008 = vmatprep.subr.bf16.mxu0 0
          %2009 = vmatpush1.bf16.msra.mxu0 0
          %2010 = vmatprep.subr.bf16.mxu0 0
          %2011 = vmatpush1.bf16.msra.mxu0 0
          %2012 = vmatprep.subr.bf16.mxu0 0
          %2013 = vmatpush1.bf16.msra.mxu0 0
          %2014 = vmatprep.subr.bf16.mxu0 0
          %2015 = vmatpush1.bf16.msra.mxu0 0
          %2016 = vmatprep.subr.bf16.mxu0 0
          %2017 = vmatpush1.bf16.msra.mxu0 0
          %2018 = vmatprep.subr.bf16.mxu0 0
          %2019 = vmatpush1.bf16.msra.mxu0 0
          %2020 = vmatprep.mubr.bf16.mxu0 0
          %2021 = vmatmul.mubr.bf16.gmra.mrb[0].mxu0 %v1977
          %v2022 = vpop.f32.mrb[0].mxu0
          %v2023 = vadd.f32 %v1919, %v2022
          %v2024 = vpop.f32.mrb[0].mxu0
          %v2025 = vpop.f32.mrb[0].mxu0
          %v2026 = vadd.f32 %v1924, %v2025
          %v2027 = vpop.f32.mrb[0].mxu0
          %2028 = vmatprep.mubr.bf16.mxu0 0
          %2029 = vmatmul.mubr.bf16.gmra.mrb[0].mxu0 %v1980
          %v2030 = vpop.f32.mrb[0].mxu0
          %v2031 = vadd.f32 %v1929, %v2030
          %v2032 = vpop.f32.mrb[0].mxu0
          %v2033 = vpop.f32.mrb[0].mxu0
          %v2034 = vadd.f32 %v1934, %v2033
          %v2035 = vpop.f32.mrb[0].mxu0
          %2036 = vmatprep.mubr.bf16.mxu0 0
          %2037 = vmatmul.mubr.bf16.gmra.mrb[0].mxu0 %v1983
          %v2038 = vpop.f32.mrb[0].mxu0
          %v2039 = vadd.f32 %v1939, %v2038
          %v2040 = vpop.f32.mrb[0].mxu0
          %v2041 = vpop.f32.mrb[0].mxu0
          %v2042 = vadd.f32 %v1944, %v2041
          %v2043 = vpop.f32.mrb[0].mxu0
          %2044 = vmatprep.mubr.bf16.mxu0 0
          %2045 = vmatmul.mubr.bf16.gmra.mrb[0].mxu0 %v1986
          %v2046 = vpop.f32.mrb[0].mxu0
          %v2047 = vadd.f32 %v1949, %v2046
          %v2048 = vpop.f32.mrb[0].mxu0
          %v2049 = vpop.f32.mrb[0].mxu0
          %v2050 = vadd.f32 %v1954, %v2049
          %v2051 = vpop.f32.mrb[0].mxu0
          %2052 = vdwg.mxu0
          %v2053 = vpack.c.bf16 %v2026, %v2023
          %v2054 = vpack.c.bf16 %v2034, %v2031
          %v2055 = vpack.c.bf16 %v2042, %v2039
          %v2056 = vpack.c.bf16 %v2050, %v2047
          %v2061 = vunpack.c.l.b16 %v2053
          %v2062 = vunpack.c.h.b16 %v2053
          %v2063 = vunpack.c.l.b16 %v2054
          %v2064 = vunpack.c.h.b16 %v2054
          %v2065 = vunpack.c.l.b16 %v2055
          %v2066 = vunpack.c.h.b16 %v2055
          %v2067 = vunpack.c.l.b16 %v2056
          %v2068 = vunpack.c.h.b16 %v2056
          %v2069 = vpack.c.b16 %v2061, %v2061
          %v2070 = vpack.c.b16 %v2062, %v2062
          %v2071 = vpack.c.b16 %v2063, %v2063
          %v2072 = vpack.c.b16 %v2064, %v2064
          %v2073 = vpack.c.b16 %v2065, %v2065
          %v2074 = vpack.c.b16 %v2066, %v2066
          %v2075 = vpack.c.b16 %v2067, %v2067
          %v2076 = vpack.c.b16 %v2068, %v2068
          %vm2085 = vcmask 60416
          %2086 = vst.msk [vmem:[%s667] sm:$0xf] %vm2085, %v2069
          %2087 = vst.msk [vmem:[%s667 + $0x4] sm:$0xf] %vm2085, %v2070
          %2088 = vst.msk [vmem:[%s667 + $0x8] sm:$0xf] %vm2085, %v2071
          %2089 = vst.msk [vmem:[%s667 + $0xc] sm:$0xf] %vm2085, %v2072
          %2090 = vst.msk [vmem:[%s667 + $0x10] sm:$0xf] %vm2085, %v2073
          %2091 = vst.msk [vmem:[%s667 + $0x14] sm:$0xf] %vm2085, %v2074
          %2092 = vst.msk [vmem:[%s667 + $0x18] sm:$0xf] %vm2085, %v2075
          %2093 = vst.msk [vmem:[%s667 + $0x1c] sm:$0xf] %vm2085, %v2076
        $region166: #{tpu_custom_call.1} parent=141 // pred_fallthru
          _
        %p2094 = scmp.lt.s32.totalorder %s31, 1
        %s2095 = scalar_select %p2094, %s31, 1
        %s2096 = smul.addr %s2095, 8
        %s2097 = smul.addr %s2096, 4
        %s2098 = scalar_lea.vmem %s12, %s2097
        // Predicated region
        $region167: #{tpu_custom_call.1} parent=141 // pred_check
          %p2099 = pneg %p335
        $region168: #{tpu_custom_call.1} parent=141 // pred_check_branch
          %2101 = sbr.rel (%p2099) target = $region170
        $region169: #{tpu_custom_call.1} parent=141 // pred_region
          _
        $region170: #{tpu_custom_call.1} parent=141 // pred_fallthru
          _
      $region142: #{tpu_custom_call.1} parent=5 // pred_fallthru
        _
      %p2102 = scmp.le.s32.totalorder 2, %s22
      // Predicated region
      $region171: #{tpu_custom_call.1} parent=5 // pred_check
        %p2103 = pneg %p2102
      $region172: #{tpu_custom_call.1} parent=5 // pred_check_branch
        %2105 = sbr.rel (%p2103) target = $region174
      $region173: #{tpu_custom_call.1} parent=5 // pred_region
        %s2106 = ssub.s32 %s22, 2
        // Predicated region
        $region175: #{tpu_custom_call.1} parent=173 // pred_check
          %p2107 = pneg %p341
        $region176: #{tpu_custom_call.1} parent=173 // pred_check_branch
          %2109 = sbr.rel (%p2107) target = $region178
        $region177: #{tpu_custom_call.1} parent=173 // pred_region
          %p2110 = scmp.lt.s32.totalorder %s33, 1
          %s2111 = scalar_select %p2110, %s33, 1
          %s2112 = smul.addr %s2111, 8
          %s2113 = smul.addr %s2112, 4
          %s2114 = scalar_lea.vmem %s12, %s2113
        $region178: #{tpu_custom_call.1} parent=173 // pred_fallthru
          _
      $region174: #{tpu_custom_call.1} parent=5 // pred_fallthru
        _
    $region6: #{tpu_custom_call.1} parent=1 // loop_footer
      %s26 = sadd.s32 1, %s22
    $region7: #{tpu_custom_call.1} parent=1 // loop_footer_branch
      %21 = sbr.rel target = $region3
    $region8: #{tpu_custom_call.1} parent=1 // loop_exit
      _
    %2115 = vsyncpa [#allocation9], 1
    %s2116 = scalar_lea.sflag [#allocation9], 1
    %2117 = vsyncpa %s2116, 1
    %2118 = vsyncpa [#allocation11], 1
    %s2119 = scalar_lea.sflag [#allocation11], 1
    %2120 = vsyncpa %s2119, 1

</llo_original>
